<compile_context>
chip_gen: v5e
topology: v5e:2x2
jax: 0.10.0
libtpu: 0.0.40
codegen_flags: <defaults>
</compile_context>

<pallas_src>
import functools

import jax
import jax.numpy as jnp
from jax import lax
from jax.experimental import pallas as pl
from jax.experimental.pallas import tpu as pltpu


def _round_up(x, m):
    return ((x + m - 1) // m) * m


def _pick_batch_tile(n, max_tile=8):
    """Largest tile <= max_tile dividing n while keeping >=2 grid steps."""
    target = max(1, min(max_tile, n // 2))
    for t in range(target, 0, -1):
        if n % t == 0:
            return t
    return 1


# ----------------------------- in-kernel math ------------------------------


def _prelu(v, a):
    # PReLU with a single (scalar) learnable parameter (PyTorch default).
    return jnp.where(v > 0, v, a * v)


def _causal_dilated_conv(x, w_ref, b_ref, *, kernel_size, dilation):
    """Causal dilated conv1d (Conv1d(padding=(k-1)*d) + Chomp1d) on a merged
    (Cp_in, B_TILE*Lp) slab.  Causality across batch segments relies on each
    segment's guard band [l, Lp) being zero (the caller re-zeros it).

    x:     (Cp_in, W)        f32 activation, W = B_TILE*Lp
    w_ref: (Cp_out, k*Cp_in) tap-concatenated weights (compute dtype, e.g. bf16)
    b_ref: (Cp_out, 1)       f32 bias
    returns (Cp_out, W) f32
    """
    cp_in = x.shape[0]
    w_dtype = w_ref.dtype
    parts = []
    for j in range(kernel_size):
        shift = (kernel_size - 1 - j) * dilation
        src = x if shift == 0 else pltpu.roll(x, shift, axis=1)  # XLU lane rotation
        parts.append(src.astype(w_dtype))                        # MXU operand dtype

    if cp_in >= 128:
        # Per-tap K is already MXU-wide: k accumulating matmuls, no big concat temp.
        acc = None
        for j in range(kernel_size):
            wj = w_ref[:, j * cp_in:(j + 1) * cp_in]
            pj = jnp.dot(wj, parts[j], preferred_element_type=jnp.float32)
            acc = pj if acc is None else acc + pj
    else:
        xs = jnp.concatenate(parts, axis=0)                      # (k*Cp_in, W) bf16
        acc = jnp.dot(w_ref[...], xs, preferred_element_type=jnp.float32)
    return acc + b_ref[...].astype(jnp.float32)


def _tcn_kernel(*refs, layer_meta, kernel_size, l_real, lp):
    """Fused forward over all TemporalBlocks for one batch tile.

    refs = (x_ref, <per-layer weight refs...>, alphas_smem_ref, o_ref)
    Per layer: w1_cat, b1, w2_cat, b2, [wd, bd if downsample].
    """
    o_ref = refs[-1]
    alphas_ref = refs[-2]
    x_ref = refs[0]
    w_refs = refs[1:-2]

    width = x_ref.shape[-1]
    # Hoisted tail mask: 1.0 on real time steps, 0.0 on each segment's guard
    # band [l_real, lp).  One iota/compare per grid step (not per tap).
    pos = lax.broadcasted_iota(jnp.int32, (1, width), 1)
    keep = ((pos % lp) < l_real).astype(jnp.float32)

    x = x_ref[...].astype(jnp.float32)   # input guard bands are zero by construction
    idx = 0
    for i, (dilation, has_ds) in enumerate(layer_meta):
        w1, b1, w2, b2 = w_refs[idx:idx + 4]
        idx += 4
        if has_ds:
            wd, bd = w_refs[idx:idx + 2]
            idx += 2

        a1 = alphas_ref[3 * i + 0]
        a2 = alphas_ref[3 * i + 1]
        ao = alphas_ref[3 * i + 2]

        h = _prelu(_causal_dilated_conv(x, w1, b1, kernel_size=kernel_size,
                                        dilation=dilation), a1)
        # TODO(synk): dropout omitted — eval/inference semantics (identity).
        h = h * keep   # re-zero guard band before the next dilated roll
        h = _prelu(_causal_dilated_conv(h, w2, b2, kernel_size=kernel_size,
                                        dilation=dilation), a2)

        if has_ds:
            res = jnp.dot(wd[...], x.astype(wd.dtype),
                          preferred_element_type=jnp.float32)
            res = res + bd[...].astype(jnp.float32)
        else:
            res = x
        x = _prelu(h + res, ao) * keep   # block output; guard band back to zero

    o_ref[...] = x.astype(o_ref.dtype)


# ------------------------------ wrapper (glue) ------------------------------


def temporal_conv_net(x, params, *, kernel_size, compute_dtype=jnp.bfloat16,
                      batch_tile=None):
    """TemporalConvNet forward. x: (N, C_in, L) -> (N, C_last, L)."""
    n, c_in0, l = x.shape
    num_layers = len(params)
    # Guard band: the largest per-layer causal shift must fit past the real data
    # so pltpu.roll wrap-around only ever picks up zeros.
    max_shift = (kernel_size - 1) * (2 ** (num_layers - 1))
    lp = _round_up(max(l + max_shift, 128), 128)      # lane-dense time axis
    cp_in0 = _round_up(max(c_in0, 8), 8)              # sublane-dense channels

    if batch_tile is None:
        batch_tile = _pick_batch_tile(n)
    assert n % batch_tile == 0, (n, batch_tile)
    n_tiles = n // batch_tile
    width = batch_tile * lp

    # (N, C, L) -> (Cp, N*Lp) slab; each batch segment carries a zero guard band.
    xp = jnp.zeros((cp_in0, n, lp), jnp.float32)
    xp = xp.at[:c_in0, :, :l].set(jnp.transpose(x, (1, 0, 2)).astype(jnp.float32))
    xp = xp.reshape(cp_in0, n * lp)

    args = [xp]
    weight_shapes = []
    layer_meta = []
    alphas = []
    c_in, cp_in = c_in0, cp_in0
    cp_max = cp_in0
    for i, p in enumerate(params):
        dilation = 2 ** i
        c_out = p["w1"].shape[0]
        cp_out = _round_up(max(c_out, 8), 8)
        cp_max = max(cp_max, cp_out)

        def pack_w(w, ci, cpi, co=c_out, cpo=cp_out):
            # (C_out, C_in, k) -> tap-concatenated, zero-padded (Cp_out, k*Cp_in).
            wp = jnp.zeros((cpo, kernel_size, cpi), jnp.float32)
            wp = wp.at[:co, :, :ci].set(jnp.transpose(w, (0, 2, 1)))
            return wp.reshape(cpo, kernel_size * cpi).astype(compute_dtype)

        def pack_b(b, cpo=cp_out):
            return jnp.zeros((cpo, 1), jnp.float32).at[:b.shape[0], 0].set(b)

        layer_args = [pack_w(p["w1"], c_in, cp_in), pack_b(p["b1"]),
                      pack_w(p["w2"], c_out, cp_out), pack_b(p["b2"])]
        has_ds = "wd" in p
        if has_ds:
            wd = jnp.zeros((cp_out, cp_in), jnp.float32)
            wd = wd.at[:c_out, :c_in].set(p["wd"]).astype(compute_dtype)
            layer_args += [wd, pack_b(p["bd"])]

        args += layer_args
        weight_shapes += [a.shape for a in layer_args]
        alphas += [p["a1"], p["a2"], p["ao"]]
        layer_meta.append((dilation, has_ds))
        c_in, cp_in = c_out, cp_out

    alphas_arr = jnp.stack([jnp.asarray(a, jnp.float32) for a in alphas])
    args.append(alphas_arr)

    cp_last, c_last = cp_in, c_in
    out_shape = jax.ShapeDtypeStruct((cp_last, n * lp), x.dtype)

    # Explicit scoped-VMEM budget (defaults: 16 MiB v5e / 32 MiB v6e, v7x).
    weight_bytes = sum(int(a.size) * a.dtype.itemsize for a in args[1:-1])
    cd_bytes = jnp.dtype(compute_dtype).itemsize
    act_bytes = 4 * cp_max * width
    xs_bytes = kernel_size * cp_max * width * cd_bytes if cp_max < 128 else 0
    io_bytes = 2 * 4 * (cp_in0 + cp_last) * width           # double-buffered in/out
    footprint = io_bytes + 2 * weight_bytes + 6 * act_bytes + xs_bytes
    vmem_limit = int(min(max(footprint * 3 // 2 + (2 << 20), 32 << 20), 100 << 20))

    kernel = functools.partial(_tcn_kernel, layer_meta=tuple(layer_meta),
                               kernel_size=kernel_size, l_real=l, lp=lp)

    def run(single_buffer_weights):
        def const_spec(shape):
            nd = len(shape)
            idx = lambda b, _nd=nd: (0,) * _nd
            if single_buffer_weights:
                # Block index never changes -> one VMEM buffer is enough.
                return pl.BlockSpec(shape, idx, pipeline_mode=pl.Buffered(1))
            return pl.BlockSpec(shape, idx)

        in_specs = ([pl.BlockSpec((cp_in0, width), lambda b: (0, b))]
                    + [const_spec(s) for s in weight_shapes]
                    + [pl.BlockSpec(memory_space=pltpu.SMEM)])
        return pl.pallas_call(
            kernel,
            out_shape=out_shape,
            grid=(n_tiles,),
            in_specs=in_specs,
            out_specs=pl.BlockSpec((cp_last, width), lambda b: (0, b)),
            compiler_params=pltpu.CompilerParams(
                dimension_semantics=("parallel",),
                vmem_limit_bytes=vmem_limit),
        )(*args)

    try:
        out = run(single_buffer_weights=True)
    except Exception:
        # Fallback if this jax build rejects pl.Buffered(1) single-buffering.
        out = run(single_buffer_weights=False)

    out = out.reshape(cp_last, n, lp)
    return jnp.transpose(out[:c_last, :, :l], (1, 0, 2))


# ----------------------------- parameter setup -----------------------------


def _weight_norm(v, g):
    # PyTorch weight_norm, dim=0: w = g * v / ||v|| (norm over non-output dims).
    norm = jnp.sqrt(jnp.sum(v * v, axis=tuple(range(1, v.ndim)), keepdims=True))
    return g * v / norm


def init_tcn_params(key, num_inputs, num_channels, kernel_size):
    params = []
    c_in = num_inputs
    for c_out in num_channels:
        key, *ks = jax.random.split(key, 9)
        v1 = 0.01 * jax.random.normal(ks[0], (c_out, c_in, kernel_size), jnp.float32)
        g1 = 1.0 + 0.1 * jax.random.normal(ks[1], (c_out, 1, 1), jnp.float32)
        v2 = 0.01 * jax.random.normal(ks[2], (c_out, c_out, kernel_size), jnp.float32)
        g2 = 1.0 + 0.1 * jax.random.normal(ks[3], (c_out, 1, 1), jnp.float32)
        p = {
            "w1": _weight_norm(v1, g1),                       # (C_out, C_in, k)
            "b1": 0.01 * jax.random.normal(ks[4], (c_out,), jnp.float32),
            "a1": jnp.asarray(0.25, jnp.float32),             # PReLU default
            "w2": _weight_norm(v2, g2),                       # (C_out, C_out, k)
            "b2": 0.01 * jax.random.normal(ks[5], (c_out,), jnp.float32),
            "a2": jnp.asarray(0.25, jnp.float32),
            "ao": jnp.asarray(0.25, jnp.float32),
        }
        if c_in != c_out:                                     # 1x1 downsample conv
            p["wd"] = 0.01 * jax.random.normal(ks[6], (c_out, c_in), jnp.float32)
            p["bd"] = 0.01 * jax.random.normal(ks[7], (c_out,), jnp.float32)
        params.append(p)
        c_in = c_out
    return params


# --------------------------- pure-JAX reference ----------------------------


def _ref_causal_conv(x, w, b, dilation):
    k = w.shape[-1]
    l = x.shape[-1]
    out = jnp.zeros((x.shape[0], w.shape[0], l), jnp.float32)
    for j in range(k):
        shift = (k - 1 - j) * dilation
        xs = jnp.pad(x, ((0, 0), (0, 0), (shift, 0)))[:, :, :l]
        out = out + jnp.einsum("oc,ncl->nol", w[:, :, j], xs)
    return out + b[None, :, None]


def ref_tcn(x, params, *, kernel_size):
    for i, p in enumerate(params):
        d = 2 ** i
        h = _prelu(_ref_causal_conv(x, p["w1"], p["b1"], d), p["a1"])
        h = _prelu(_ref_causal_conv(h, p["w2"], p["b2"], d), p["a2"])
        if "wd" in p:
            res = jnp.einsum("oc,ncl->nol", p["wd"], x) + p["bd"][None, :, None]
        else:
            res = x
        x = _prelu(h + res, p["ao"])
    return x


# ----------------------------------- main -----------------------------------


if __name__ == "__main__":
    key = jax.random.PRNGKey(0)
    k_x, k_p = jax.random.split(key)

    N, num_inputs, L = 2, 4, 16
    num_channels = [8, 16, 16]   # last block exercises the identity-residual path
    kernel_size = 2

    x = jax.random.normal(k_x, (N, num_inputs, L), jnp.float32)
    params = init_tcn_params(k_p, num_inputs, num_channels, kernel_size)

    # bf16 MXU operands (default compute_dtype) with f32 accumulation.
    y = temporal_conv_net(x, params, kernel_size=kernel_size)
    y = jax.block_until_ready(y)

    y_ref = ref_tcn(x, params, kernel_size=kernel_size)
    assert y.shape == (N, num_channels[-1], L), y.shape
    max_err = float(jnp.max(jnp.abs(y - y_ref)))
    # Tolerance loosened vs the f32 reference because matmul operands are bf16.
    assert jnp.allclose(y, y_ref, atol=1e-2, rtol=1e-2), max_err

    print("KERNEL_OK")
</pallas_src>

<mosaic_0001>
module attributes {stable_mosaic.version = 11 : i64} {
  func.func @_tcn_kernel(%arg0: i32, %arg1: memref<8x128xf32, #tpu.memory_space<vmem>>, %arg2: memref<8x16xbf16, #tpu.memory_space<vmem>>, %arg3: memref<8x1xf32, #tpu.memory_space<vmem>>, %arg4: memref<8x16xbf16, #tpu.memory_space<vmem>>, %arg5: memref<8x1xf32, #tpu.memory_space<vmem>>, %arg6: memref<8x8xbf16, #tpu.memory_space<vmem>>, %arg7: memref<8x1xf32, #tpu.memory_space<vmem>>, %arg8: memref<16x16xbf16, #tpu.memory_space<vmem>>, %arg9: memref<16x1xf32, #tpu.memory_space<vmem>>, %arg10: memref<16x32xbf16, #tpu.memory_space<vmem>>, %arg11: memref<16x1xf32, #tpu.memory_space<vmem>>, %arg12: memref<16x8xbf16, #tpu.memory_space<vmem>>, %arg13: memref<16x1xf32, #tpu.memory_space<vmem>>, %arg14: memref<16x32xbf16, #tpu.memory_space<vmem>>, %arg15: memref<16x1xf32, #tpu.memory_space<vmem>>, %arg16: memref<16x32xbf16, #tpu.memory_space<vmem>>, %arg17: memref<16x1xf32, #tpu.memory_space<vmem>>, %arg18: memref<9xf32, #tpu.memory_space<smem>>, %arg19: memref<16x128xf32, #tpu.memory_space<vmem>>) attributes {dimension_semantics = [#tpu.dimension_semantics<parallel>], iteration_bounds = array<i64: 2>, scalar_prefetch = 0 : i64, scratch_operands = 0 : i64, tpu.core_type = #tpu.core_type<tc>, window_params = [{transform_indices = @transform_0, window_bounds = array<i64: 8, 128>}, {pipeline_mode = #tpu.pipeline_mode<synchronous>, transform_indices = @transform_1, window_bounds = array<i64: 8, 16>}, {pipeline_mode = #tpu.pipeline_mode<synchronous>, transform_indices = @transform_2, window_bounds = array<i64: 8, 1>}, {pipeline_mode = #tpu.pipeline_mode<synchronous>, transform_indices = @transform_3, window_bounds = array<i64: 8, 16>}, {pipeline_mode = #tpu.pipeline_mode<synchronous>, transform_indices = @transform_4, window_bounds = array<i64: 8, 1>}, {pipeline_mode = #tpu.pipeline_mode<synchronous>, transform_indices = @transform_5, window_bounds = array<i64: 8, 8>}, {pipeline_mode = #tpu.pipeline_mode<synchronous>, transform_indices = @transform_6, window_bounds = array<i64: 8, 1>}, {pipeline_mode = #tpu.pipeline_mode<synchronous>, transform_indices = @transform_7, window_bounds = array<i64: 16, 16>}, {pipeline_mode = #tpu.pipeline_mode<synchronous>, transform_indices = @transform_8, window_bounds = array<i64: 16, 1>}, {pipeline_mode = #tpu.pipeline_mode<synchronous>, transform_indices = @transform_9, window_bounds = array<i64: 16, 32>}, {pipeline_mode = #tpu.pipeline_mode<synchronous>, transform_indices = @transform_10, window_bounds = array<i64: 16, 1>}, {pipeline_mode = #tpu.pipeline_mode<synchronous>, transform_indices = @transform_11, window_bounds = array<i64: 16, 8>}, {pipeline_mode = #tpu.pipeline_mode<synchronous>, transform_indices = @transform_12, window_bounds = array<i64: 16, 1>}, {pipeline_mode = #tpu.pipeline_mode<synchronous>, transform_indices = @transform_13, window_bounds = array<i64: 16, 32>}, {pipeline_mode = #tpu.pipeline_mode<synchronous>, transform_indices = @transform_14, window_bounds = array<i64: 16, 1>}, {pipeline_mode = #tpu.pipeline_mode<synchronous>, transform_indices = @transform_15, window_bounds = array<i64: 16, 32>}, {pipeline_mode = #tpu.pipeline_mode<synchronous>, transform_indices = @transform_16, window_bounds = array<i64: 16, 1>}, {transform_indices = @transform_17, window_bounds = array<i64: 9>}, {transform_indices = @transform_18, window_bounds = array<i64: 16, 128>}]} {
    %0 = tpu.iota {dimensions = array<i32: 1>} : vector<1x128xi32>
    %c128_i32 = arith.constant 128 : i32
    %c0_i32 = arith.constant 0 : i32
    %1 = arith.cmpi eq, %c128_i32, %c0_i32 : i32
    %c1_i32 = arith.constant 1 : i32
    %2 = arith.select %1, %c1_i32, %c128_i32 : i32
    %3 = vector.broadcast %2 : i32 to vector<1x128xi32>
    %4 = arith.remsi %0, %3 : vector<1x128xi32>
    %c0_i32_0 = arith.constant 0 : i32
    %5 = vector.broadcast %c0_i32_0 : i32 to vector<1x128xi32>
    %6 = arith.cmpi ne, %4, %5 : vector<1x128xi32>
    %c0_i32_1 = arith.constant 0 : i32
    %7 = vector.broadcast %c0_i32_1 : i32 to vector<1x128xi32>
    %8 = arith.cmpi slt, %4, %7 : vector<1x128xi32>
    %c0_i32_2 = arith.constant 0 : i32
    %9 = arith.cmpi slt, %2, %c0_i32_2 : i32
    %10 = vector.broadcast %9 : i1 to vector<1x128xi1>
    %11 = vector.broadcast %10 : vector<1x128xi1> to vector<1x128xi1>
    %12 = arith.xori %8, %11 : vector<1x128xi1>
    %13 = arith.andi %12, %6 : vector<1x128xi1>
    %14 = vector.broadcast %2 : i32 to vector<1x128xi32>
    %15 = arith.addi %4, %14 : vector<1x128xi32>
    %16 = arith.select %13, %15, %4 : vector<1x128xi1>, vector<1x128xi32>
    %c16_i32 = arith.constant 16 : i32
    %17 = vector.broadcast %c16_i32 : i32 to vector<1x128xi32>
    %18 = arith.cmpi slt, %16, %17 : vector<1x128xi32>
    %19 = arith.extui %18 : vector<1x128xi1> to vector<1x128xi32>
    %20 = arith.sitofp %19 : vector<1x128xi32> to vector<1x128xf32>
    %c0 = arith.constant 0 : index
    %c0_3 = arith.constant 0 : index
    %21 = vector.load %arg1[%c0, %c0_3] : memref<8x128xf32, #tpu.memory_space<vmem>>, vector<8x128xf32>
    %c0_4 = arith.constant 0 : index
    %22 = memref.load %arg18[%c0_4] : memref<9xf32, #tpu.memory_space<smem>>
    %c1 = arith.constant 1 : index
    %23 = memref.load %arg18[%c1] : memref<9xf32, #tpu.memory_space<smem>>
    %c2 = arith.constant 2 : index
    %24 = memref.load %arg18[%c2] : memref<9xf32, #tpu.memory_space<smem>>
    %c1_i32_5 = arith.constant 1 : i32
    %25 = tpu.dynamic_rotate %21 by %c1_i32_5 dim 1 : vector<8x128xf32>, i32 -> vector<8x128xf32>
    %26 = arith.truncf %25 : vector<8x128xf32> to vector<8x128xbf16>
    %27 = arith.truncf %21 : vector<8x128xf32> to vector<8x128xbf16>
    %28 = tpu.concatenate %26, %27 in 0 : vector<8x128xbf16>, vector<8x128xbf16> -> vector<16x128xbf16>
    %c0_6 = arith.constant 0 : index
    %c0_7 = arith.constant 0 : index
    %29 = vector.load %arg2[%c0_6, %c0_7] : memref<8x16xbf16, #tpu.memory_space<vmem>>, vector<8x16xbf16>
    %cst = arith.constant dense<0.000000e+00> : vector<8x128xf32>
    %30 = tpu.matmul %29, %28, %cst {dimension_numbers = #tpu.dot_dimension_numbers<[1], [0], [0], [1], [0, 0, 1, 1], [], []>} : vector<8x16xbf16>, vector<16x128xbf16>, vector<8x128xf32> -> vector<8x128xf32>
    %c0_8 = arith.constant 0 : index
    %c0_9 = arith.constant 0 : index
    %31 = vector.load %arg3[%c0_8, %c0_9] : memref<8x1xf32, #tpu.memory_space<vmem>>, vector<8x1xf32>
    %32 = vector.broadcast %31 : vector<8x1xf32> to vector<8x128xf32>
    %33 = arith.addf %30, %32 : vector<8x128xf32>
    %cst_10 = arith.constant 0.000000e+00 : f32
    %34 = vector.broadcast %cst_10 : f32 to vector<8x128xf32>
    %35 = arith.cmpf ogt, %33, %34 : vector<8x128xf32>
    %36 = vector.broadcast %22 : f32 to vector<8x128xf32>
    %37 = arith.mulf %36, %33 : vector<8x128xf32>
    %38 = arith.select %35, %33, %37 : vector<8x128xi1>, vector<8x128xf32>
    %39 = vector.broadcast %20 : vector<1x128xf32> to vector<8x128xf32>
    %40 = arith.mulf %38, %39 : vector<8x128xf32>
    %c1_i32_11 = arith.constant 1 : i32
    %41 = tpu.dynamic_rotate %40 by %c1_i32_11 dim 1 : vector<8x128xf32>, i32 -> vector<8x128xf32>
    %42 = arith.truncf %41 : vector<8x128xf32> to vector<8x128xbf16>
    %43 = arith.truncf %40 : vector<8x128xf32> to vector<8x128xbf16>
    %44 = tpu.concatenate %42, %43 in 0 : vector<8x128xbf16>, vector<8x128xbf16> -> vector<16x128xbf16>
    %c0_12 = arith.constant 0 : index
    %c0_13 = arith.constant 0 : index
    %45 = vector.load %arg4[%c0_12, %c0_13] : memref<8x16xbf16, #tpu.memory_space<vmem>>, vector<8x16xbf16>
    %cst_14 = arith.constant dense<0.000000e+00> : vector<8x128xf32>
    %46 = tpu.matmul %45, %44, %cst_14 {dimension_numbers = #tpu.dot_dimension_numbers<[1], [0], [0], [1], [0, 0, 1, 1], [], []>} : vector<8x16xbf16>, vector<16x128xbf16>, vector<8x128xf32> -> vector<8x128xf32>
    %c0_15 = arith.constant 0 : index
    %c0_16 = arith.constant 0 : index
    %47 = vector.load %arg5[%c0_15, %c0_16] : memref<8x1xf32, #tpu.memory_space<vmem>>, vector<8x1xf32>
    %48 = vector.broadcast %47 : vector<8x1xf32> to vector<8x128xf32>
    %49 = arith.addf %46, %48 : vector<8x128xf32>
    %cst_17 = arith.constant 0.000000e+00 : f32
    %50 = vector.broadcast %cst_17 : f32 to vector<8x128xf32>
    %51 = arith.cmpf ogt, %49, %50 : vector<8x128xf32>
    %52 = vector.broadcast %23 : f32 to vector<8x128xf32>
    %53 = arith.mulf %52, %49 : vector<8x128xf32>
    %54 = arith.select %51, %49, %53 : vector<8x128xi1>, vector<8x128xf32>
    %c0_18 = arith.constant 0 : index
    %c0_19 = arith.constant 0 : index
    %55 = vector.load %arg6[%c0_18, %c0_19] : memref<8x8xbf16, #tpu.memory_space<vmem>>, vector<8x8xbf16>
    %56 = arith.truncf %21 : vector<8x128xf32> to vector<8x128xbf16>
    %cst_20 = arith.constant dense<0.000000e+00> : vector<8x128xf32>
    %57 = tpu.matmul %55, %56, %cst_20 {dimension_numbers = #tpu.dot_dimension_numbers<[1], [0], [0], [1], [0, 0, 1, 1], [], []>} : vector<8x8xbf16>, vector<8x128xbf16>, vector<8x128xf32> -> vector<8x128xf32>
    %c0_21 = arith.constant 0 : index
    %c0_22 = arith.constant 0 : index
    %58 = vector.load %arg7[%c0_21, %c0_22] : memref<8x1xf32, #tpu.memory_space<vmem>>, vector<8x1xf32>
    %59 = vector.broadcast %58 : vector<8x1xf32> to vector<8x128xf32>
    %60 = arith.addf %57, %59 : vector<8x128xf32>
    %61 = arith.addf %54, %60 : vector<8x128xf32>
    %cst_23 = arith.constant 0.000000e+00 : f32
    %62 = vector.broadcast %cst_23 : f32 to vector<8x128xf32>
    %63 = arith.cmpf ogt, %61, %62 : vector<8x128xf32>
    %64 = vector.broadcast %24 : f32 to vector<8x128xf32>
    %65 = arith.mulf %64, %61 : vector<8x128xf32>
    %66 = arith.select %63, %61, %65 : vector<8x128xi1>, vector<8x128xf32>
    %67 = vector.broadcast %20 : vector<1x128xf32> to vector<8x128xf32>
    %68 = arith.mulf %66, %67 : vector<8x128xf32>
    %c3 = arith.constant 3 : index
    %69 = memref.load %arg18[%c3] : memref<9xf32, #tpu.memory_space<smem>>
    %c4 = arith.constant 4 : index
    %70 = memref.load %arg18[%c4] : memref<9xf32, #tpu.memory_space<smem>>
    %c5 = arith.constant 5 : index
    %71 = memref.load %arg18[%c5] : memref<9xf32, #tpu.memory_space<smem>>
    %c2_i32 = arith.constant 2 : i32
    %72 = tpu.dynamic_rotate %68 by %c2_i32 dim 1 : vector<8x128xf32>, i32 -> vector<8x128xf32>
    %73 = arith.truncf %72 : vector<8x128xf32> to vector<8x128xbf16>
    %74 = arith.truncf %68 : vector<8x128xf32> to vector<8x128xbf16>
    %75 = tpu.concatenate %73, %74 in 0 : vector<8x128xbf16>, vector<8x128xbf16> -> vector<16x128xbf16>
    %c0_24 = arith.constant 0 : index
    %c0_25 = arith.constant 0 : index
    %76 = vector.load %arg8[%c0_24, %c0_25] : memref<16x16xbf16, #tpu.memory_space<vmem>>, vector<16x16xbf16>
    %cst_26 = arith.constant dense<0.000000e+00> : vector<16x128xf32>
    %77 = tpu.matmul %76, %75, %cst_26 {dimension_numbers = #tpu.dot_dimension_numbers<[1], [0], [0], [1], [0, 0, 1, 1], [], []>} : vector<16x16xbf16>, vector<16x128xbf16>, vector<16x128xf32> -> vector<16x128xf32>
    %c0_27 = arith.constant 0 : index
    %c0_28 = arith.constant 0 : index
    %78 = vector.load %arg9[%c0_27, %c0_28] : memref<16x1xf32, #tpu.memory_space<vmem>>, vector<16x1xf32>
    %79 = vector.broadcast %78 : vector<16x1xf32> to vector<16x128xf32>
    %80 = arith.addf %77, %79 : vector<16x128xf32>
    %cst_29 = arith.constant 0.000000e+00 : f32
    %81 = vector.broadcast %cst_29 : f32 to vector<16x128xf32>
    %82 = arith.cmpf ogt, %80, %81 : vector<16x128xf32>
    %83 = vector.broadcast %69 : f32 to vector<16x128xf32>
    %84 = arith.mulf %83, %80 : vector<16x128xf32>
    %85 = arith.select %82, %80, %84 : vector<16x128xi1>, vector<16x128xf32>
    %86 = vector.broadcast %20 : vector<1x128xf32> to vector<16x128xf32>
    %87 = arith.mulf %85, %86 : vector<16x128xf32>
    %c2_i32_30 = arith.constant 2 : i32
    %88 = tpu.dynamic_rotate %87 by %c2_i32_30 dim 1 : vector<16x128xf32>, i32 -> vector<16x128xf32>
    %89 = arith.truncf %88 : vector<16x128xf32> to vector<16x128xbf16>
    %90 = arith.truncf %87 : vector<16x128xf32> to vector<16x128xbf16>
    %91 = tpu.concatenate %89, %90 in 0 : vector<16x128xbf16>, vector<16x128xbf16> -> vector<32x128xbf16>
    %c0_31 = arith.constant 0 : index
    %c0_32 = arith.constant 0 : index
    %92 = vector.load %arg10[%c0_31, %c0_32] : memref<16x32xbf16, #tpu.memory_space<vmem>>, vector<16x32xbf16>
    %cst_33 = arith.constant dense<0.000000e+00> : vector<16x128xf32>
    %93 = tpu.matmul %92, %91, %cst_33 {dimension_numbers = #tpu.dot_dimension_numbers<[1], [0], [0], [1], [0, 0, 1, 1], [], []>} : vector<16x32xbf16>, vector<32x128xbf16>, vector<16x128xf32> -> vector<16x128xf32>
    %c0_34 = arith.constant 0 : index
    %c0_35 = arith.constant 0 : index
    %94 = vector.load %arg11[%c0_34, %c0_35] : memref<16x1xf32, #tpu.memory_space<vmem>>, vector<16x1xf32>
    %95 = vector.broadcast %94 : vector<16x1xf32> to vector<16x128xf32>
    %96 = arith.addf %93, %95 : vector<16x128xf32>
    %cst_36 = arith.constant 0.000000e+00 : f32
    %97 = vector.broadcast %cst_36 : f32 to vector<16x128xf32>
    %98 = arith.cmpf ogt, %96, %97 : vector<16x128xf32>
    %99 = vector.broadcast %70 : f32 to vector<16x128xf32>
    %100 = arith.mulf %99, %96 : vector<16x128xf32>
    %101 = arith.select %98, %96, %100 : vector<16x128xi1>, vector<16x128xf32>
    %c0_37 = arith.constant 0 : index
    %c0_38 = arith.constant 0 : index
    %102 = vector.load %arg12[%c0_37, %c0_38] : memref<16x8xbf16, #tpu.memory_space<vmem>>, vector<16x8xbf16>
    %103 = arith.truncf %68 : vector<8x128xf32> to vector<8x128xbf16>
    %cst_39 = arith.constant dense<0.000000e+00> : vector<16x128xf32>
    %104 = tpu.matmul %102, %103, %cst_39 {dimension_numbers = #tpu.dot_dimension_numbers<[1], [0], [0], [1], [0, 0, 1, 1], [], []>} : vector<16x8xbf16>, vector<8x128xbf16>, vector<16x128xf32> -> vector<16x128xf32>
    %c0_40 = arith.constant 0 : index
    %c0_41 = arith.constant 0 : index
    %105 = vector.load %arg13[%c0_40, %c0_41] : memref<16x1xf32, #tpu.memory_space<vmem>>, vector<16x1xf32>
    %106 = vector.broadcast %105 : vector<16x1xf32> to vector<16x128xf32>
    %107 = arith.addf %104, %106 : vector<16x128xf32>
    %108 = arith.addf %101, %107 : vector<16x128xf32>
    %cst_42 = arith.constant 0.000000e+00 : f32
    %109 = vector.broadcast %cst_42 : f32 to vector<16x128xf32>
    %110 = arith.cmpf ogt, %108, %109 : vector<16x128xf32>
    %111 = vector.broadcast %71 : f32 to vector<16x128xf32>
    %112 = arith.mulf %111, %108 : vector<16x128xf32>
    %113 = arith.select %110, %108, %112 : vector<16x128xi1>, vector<16x128xf32>
    %114 = vector.broadcast %20 : vector<1x128xf32> to vector<16x128xf32>
    %115 = arith.mulf %113, %114 : vector<16x128xf32>
    %c6 = arith.constant 6 : index
    %116 = memref.load %arg18[%c6] : memref<9xf32, #tpu.memory_space<smem>>
    %c7 = arith.constant 7 : index
    %117 = memref.load %arg18[%c7] : memref<9xf32, #tpu.memory_space<smem>>
    %c8 = arith.constant 8 : index
    %118 = memref.load %arg18[%c8] : memref<9xf32, #tpu.memory_space<smem>>
    %c4_i32 = arith.constant 4 : i32
    %119 = tpu.dynamic_rotate %115 by %c4_i32 dim 1 : vector<16x128xf32>, i32 -> vector<16x128xf32>
    %120 = arith.truncf %119 : vector<16x128xf32> to vector<16x128xbf16>
    %121 = arith.truncf %115 : vector<16x128xf32> to vector<16x128xbf16>
    %122 = tpu.concatenate %120, %121 in 0 : vector<16x128xbf16>, vector<16x128xbf16> -> vector<32x128xbf16>
    %c0_43 = arith.constant 0 : index
    %c0_44 = arith.constant 0 : index
    %123 = vector.load %arg14[%c0_43, %c0_44] : memref<16x32xbf16, #tpu.memory_space<vmem>>, vector<16x32xbf16>
    %cst_45 = arith.constant dense<0.000000e+00> : vector<16x128xf32>
    %124 = tpu.matmul %123, %122, %cst_45 {dimension_numbers = #tpu.dot_dimension_numbers<[1], [0], [0], [1], [0, 0, 1, 1], [], []>} : vector<16x32xbf16>, vector<32x128xbf16>, vector<16x128xf32> -> vector<16x128xf32>
    %c0_46 = arith.constant 0 : index
    %c0_47 = arith.constant 0 : index
    %125 = vector.load %arg15[%c0_46, %c0_47] : memref<16x1xf32, #tpu.memory_space<vmem>>, vector<16x1xf32>
    %126 = vector.broadcast %125 : vector<16x1xf32> to vector<16x128xf32>
    %127 = arith.addf %124, %126 : vector<16x128xf32>
    %cst_48 = arith.constant 0.000000e+00 : f32
    %128 = vector.broadcast %cst_48 : f32 to vector<16x128xf32>
    %129 = arith.cmpf ogt, %127, %128 : vector<16x128xf32>
    %130 = vector.broadcast %116 : f32 to vector<16x128xf32>
    %131 = arith.mulf %130, %127 : vector<16x128xf32>
    %132 = arith.select %129, %127, %131 : vector<16x128xi1>, vector<16x128xf32>
    %133 = vector.broadcast %20 : vector<1x128xf32> to vector<16x128xf32>
    %134 = arith.mulf %132, %133 : vector<16x128xf32>
    %c4_i32_49 = arith.constant 4 : i32
    %135 = tpu.dynamic_rotate %134 by %c4_i32_49 dim 1 : vector<16x128xf32>, i32 -> vector<16x128xf32>
    %136 = arith.truncf %135 : vector<16x128xf32> to vector<16x128xbf16>
    %137 = arith.truncf %134 : vector<16x128xf32> to vector<16x128xbf16>
    %138 = tpu.concatenate %136, %137 in 0 : vector<16x128xbf16>, vector<16x128xbf16> -> vector<32x128xbf16>
    %c0_50 = arith.constant 0 : index
    %c0_51 = arith.constant 0 : index
    %139 = vector.load %arg16[%c0_50, %c0_51] : memref<16x32xbf16, #tpu.memory_space<vmem>>, vector<16x32xbf16>
    %cst_52 = arith.constant dense<0.000000e+00> : vector<16x128xf32>
    %140 = tpu.matmul %139, %138, %cst_52 {dimension_numbers = #tpu.dot_dimension_numbers<[1], [0], [0], [1], [0, 0, 1, 1], [], []>} : vector<16x32xbf16>, vector<32x128xbf16>, vector<16x128xf32> -> vector<16x128xf32>
    %c0_53 = arith.constant 0 : index
    %c0_54 = arith.constant 0 : index
    %141 = vector.load %arg17[%c0_53, %c0_54] : memref<16x1xf32, #tpu.memory_space<vmem>>, vector<16x1xf32>
    %142 = vector.broadcast %141 : vector<16x1xf32> to vector<16x128xf32>
    %143 = arith.addf %140, %142 : vector<16x128xf32>
    %cst_55 = arith.constant 0.000000e+00 : f32
    %144 = vector.broadcast %cst_55 : f32 to vector<16x128xf32>
    %145 = arith.cmpf ogt, %143, %144 : vector<16x128xf32>
    %146 = vector.broadcast %117 : f32 to vector<16x128xf32>
    %147 = arith.mulf %146, %143 : vector<16x128xf32>
    %148 = arith.select %145, %143, %147 : vector<16x128xi1>, vector<16x128xf32>
    %149 = arith.addf %148, %115 : vector<16x128xf32>
    %cst_56 = arith.constant 0.000000e+00 : f32
    %150 = vector.broadcast %cst_56 : f32 to vector<16x128xf32>
    %151 = arith.cmpf ogt, %149, %150 : vector<16x128xf32>
    %152 = vector.broadcast %118 : f32 to vector<16x128xf32>
    %153 = arith.mulf %152, %149 : vector<16x128xf32>
    %154 = arith.select %151, %149, %153 : vector<16x128xi1>, vector<16x128xf32>
    %155 = vector.broadcast %20 : vector<1x128xf32> to vector<16x128xf32>
    %156 = arith.mulf %154, %155 : vector<16x128xf32>
    %c0_57 = arith.constant 0 : index
    %c0_58 = arith.constant 0 : index
    %157 = vector.load %arg19[%c0_57, %c0_58] : memref<16x128xf32, #tpu.memory_space<vmem>>, vector<16x128xf32>
    tpu.vector_store %arg19[%c0_57, %c0_58], %156 {strides = array<i32>} : memref<16x128xf32, #tpu.memory_space<vmem>>, vector<16x128xf32>,
    return
  }
  func.func @transform_0(%arg0: i32) -> (i32, i32) {
    %c0_i32 = arith.constant 0 : i32
    %c0_i32_0 = arith.constant 0 : i32
    return %c0_i32, %arg0 : i32, i32
  }
  func.func @transform_1(%arg0: i32) -> (i32, i32) {
    %c0_i32 = arith.constant 0 : i32
    %c0_i32_0 = arith.constant 0 : i32
    %c0_i32_1 = arith.constant 0 : i32
    return %c0_i32, %c0_i32_0 : i32, i32
  }
  func.func @transform_2(%arg0: i32) -> (i32, i32) {
    %c0_i32 = arith.constant 0 : i32
    %c0_i32_0 = arith.constant 0 : i32
    %c0_i32_1 = arith.constant 0 : i32
    return %c0_i32, %c0_i32_0 : i32, i32
  }
  func.func @transform_3(%arg0: i32) -> (i32, i32) {
    %c0_i32 = arith.constant 0 : i32
    %c0_i32_0 = arith.constant 0 : i32
    %c0_i32_1 = arith.constant 0 : i32
    return %c0_i32, %c0_i32_0 : i32, i32
  }
  func.func @transform_4(%arg0: i32) -> (i32, i32) {
    %c0_i32 = arith.constant 0 : i32
    %c0_i32_0 = arith.constant 0 : i32
    %c0_i32_1 = arith.constant 0 : i32
    return %c0_i32, %c0_i32_0 : i32, i32
  }
  func.func @transform_5(%arg0: i32) -> (i32, i32) {
    %c0_i32 = arith.constant 0 : i32
    %c0_i32_0 = arith.constant 0 : i32
    %c0_i32_1 = arith.constant 0 : i32
    return %c0_i32, %c0_i32_0 : i32, i32
  }
  func.func @transform_6(%arg0: i32) -> (i32, i32) {
    %c0_i32 = arith.constant 0 : i32
    %c0_i32_0 = arith.constant 0 : i32
    %c0_i32_1 = arith.constant 0 : i32
    return %c0_i32, %c0_i32_0 : i32, i32
  }
  func.func @transform_7(%arg0: i32) -> (i32, i32) {
    %c0_i32 = arith.constant 0 : i32
    %c0_i32_0 = arith.constant 0 : i32
    %c0_i32_1 = arith.constant 0 : i32
    return %c0_i32, %c0_i32_0 : i32, i32
  }
  func.func @transform_8(%arg0: i32) -> (i32, i32) {
    %c0_i32 = arith.constant 0 : i32
    %c0_i32_0 = arith.constant 0 : i32
    %c0_i32_1 = arith.constant 0 : i32
    return %c0_i32, %c0_i32_0 : i32, i32
  }
  func.func @transform_9(%arg0: i32) -> (i32, i32) {
    %c0_i32 = arith.constant 0 : i32
    %c0_i32_0 = arith.constant 0 : i32
    %c0_i32_1 = arith.constant 0 : i32
    return %c0_i32, %c0_i32_0 : i32, i32
  }
  func.func @transform_10(%arg0: i32) -> (i32, i32) {
    %c0_i32 = arith.constant 0 : i32
    %c0_i32_0 = arith.constant 0 : i32
    %c0_i32_1 = arith.constant 0 : i32
    return %c0_i32, %c0_i32_0 : i32, i32
  }
  func.func @transform_11(%arg0: i32) -> (i32, i32) {
    %c0_i32 = arith.constant 0 : i32
    %c0_i32_0 = arith.constant 0 : i32
    %c0_i32_1 = arith.constant 0 : i32
    return %c0_i32, %c0_i32_0 : i32, i32
  }
  func.func @transform_12(%arg0: i32) -> (i32, i32) {
    %c0_i32 = arith.constant 0 : i32
    %c0_i32_0 = arith.constant 0 : i32
    %c0_i32_1 = arith.constant 0 : i32
    return %c0_i32, %c0_i32_0 : i32, i32
  }
  func.func @transform_13(%arg0: i32) -> (i32, i32) {
    %c0_i32 = arith.constant 0 : i32
    %c0_i32_0 = arith.constant 0 : i32
    %c0_i32_1 = arith.constant 0 : i32
    return %c0_i32, %c0_i32_0 : i32, i32
  }
  func.func @transform_14(%arg0: i32) -> (i32, i32) {
    %c0_i32 = arith.constant 0 : i32
    %c0_i32_0 = arith.constant 0 : i32
    %c0_i32_1 = arith.constant 0 : i32
    return %c0_i32, %c0_i32_0 : i32, i32
  }
  func.func @transform_15(%arg0: i32) -> (i32, i32) {
    %c0_i32 = arith.constant 0 : i32
    %c0_i32_0 = arith.constant 0 : i32
    %c0_i32_1 = arith.constant 0 : i32
    return %c0_i32, %c0_i32_0 : i32, i32
  }
  func.func @transform_16(%arg0: i32) -> (i32, i32) {
    %c0_i32 = arith.constant 0 : i32
    %c0_i32_0 = arith.constant 0 : i32
    %c0_i32_1 = arith.constant 0 : i32
    return %c0_i32, %c0_i32_0 : i32, i32
  }
  func.func @transform_17(%arg0: i32) -> i32 {
    %c0_i32 = arith.constant 0 : i32
    %c0_i32_0 = arith.constant 0 : i32
    return %c0_i32 : i32
  }
  func.func @transform_18(%arg0: i32) -> (i32, i32) {
    %c0_i32 = arith.constant 0 : i32
    %c0_i32_0 = arith.constant 0 : i32
    return %c0_i32, %arg0 : i32, i32
  }
}

module attributes {stable_mosaic.version = 11 : i64} {
  func.func @_tcn_kernel(%arg0: i32, %arg1: memref<8x128xf32, #tpu.memory_space<vmem>>, %arg2: memref<8x16xbf16, #tpu.memory_space<vmem>>, %arg3: memref<8x1xf32, #tpu.memory_space<vmem>>, %arg4: memref<8x16xbf16, #tpu.memory_space<vmem>>, %arg5: memref<8x1xf32, #tpu.memory_space<vmem>>, %arg6: memref<8x8xbf16, #tpu.memory_space<vmem>>, %arg7: memref<8x1xf32, #tpu.memory_space<vmem>>, %arg8: memref<16x16xbf16, #tpu.memory_space<vmem>>, %arg9: memref<16x1xf32, #tpu.memory_space<vmem>>, %arg10: memref<16x32xbf16, #tpu.memory_space<vmem>>, %arg11: memref<16x1xf32, #tpu.memory_space<vmem>>, %arg12: memref<16x8xbf16, #tpu.memory_space<vmem>>, %arg13: memref<16x1xf32, #tpu.memory_space<vmem>>, %arg14: memref<16x32xbf16, #tpu.memory_space<vmem>>, %arg15: memref<16x1xf32, #tpu.memory_space<vmem>>, %arg16: memref<16x32xbf16, #tpu.memory_space<vmem>>, %arg17: memref<16x1xf32, #tpu.memory_space<vmem>>, %arg18: memref<9xf32, #tpu.memory_space<smem>>, %arg19: memref<16x128xf32, #tpu.memory_space<vmem>>) attributes {dimension_semantics = [#tpu.dimension_semantics<parallel>], iteration_bounds = array<i64: 2>, scalar_prefetch = 0 : i64, scratch_operands = 0 : i64, tpu.core_type = #tpu.core_type<tc>, window_params = [{transform_indices = @transform_0, window_bounds = array<i64: 8, 128>}, {pipeline_mode = #tpu.pipeline_mode<synchronous>, transform_indices = @transform_1, window_bounds = array<i64: 8, 16>}, {pipeline_mode = #tpu.pipeline_mode<synchronous>, transform_indices = @transform_2, window_bounds = array<i64: 8, 1>}, {pipeline_mode = #tpu.pipeline_mode<synchronous>, transform_indices = @transform_3, window_bounds = array<i64: 8, 16>}, {pipeline_mode = #tpu.pipeline_mode<synchronous>, transform_indices = @transform_4, window_bounds = array<i64: 8, 1>}, {pipeline_mode = #tpu.pipeline_mode<synchronous>, transform_indices = @transform_5, window_bounds = array<i64: 8, 8>}, {pipeline_mode = #tpu.pipeline_mode<synchronous>, transform_indices = @transform_6, window_bounds = array<i64: 8, 1>}, {pipeline_mode = #tpu.pipeline_mode<synchronous>, transform_indices = @transform_7, window_bounds = array<i64: 16, 16>}, {pipeline_mode = #tpu.pipeline_mode<synchronous>, transform_indices = @transform_8, window_bounds = array<i64: 16, 1>}, {pipeline_mode = #tpu.pipeline_mode<synchronous>, transform_indices = @transform_9, window_bounds = array<i64: 16, 32>}, {pipeline_mode = #tpu.pipeline_mode<synchronous>, transform_indices = @transform_10, window_bounds = array<i64: 16, 1>}, {pipeline_mode = #tpu.pipeline_mode<synchronous>, transform_indices = @transform_11, window_bounds = array<i64: 16, 8>}, {pipeline_mode = #tpu.pipeline_mode<synchronous>, transform_indices = @transform_12, window_bounds = array<i64: 16, 1>}, {pipeline_mode = #tpu.pipeline_mode<synchronous>, transform_indices = @transform_13, window_bounds = array<i64: 16, 32>}, {pipeline_mode = #tpu.pipeline_mode<synchronous>, transform_indices = @transform_14, window_bounds = array<i64: 16, 1>}, {pipeline_mode = #tpu.pipeline_mode<synchronous>, transform_indices = @transform_15, window_bounds = array<i64: 16, 32>}, {pipeline_mode = #tpu.pipeline_mode<synchronous>, transform_indices = @transform_16, window_bounds = array<i64: 16, 1>}, {transform_indices = @transform_17, window_bounds = array<i64: 9>}, {transform_indices = @transform_18, window_bounds = array<i64: 16, 128>}]} {
    %0 = tpu.iota {dimensions = array<i32: 1>} : vector<1x128xi32>
    %c128_i32 = arith.constant 128 : i32
    %c0_i32 = arith.constant 0 : i32
    %1 = arith.cmpi eq, %c128_i32, %c0_i32 : i32
    %c1_i32 = arith.constant 1 : i32
    %2 = arith.select %1, %c1_i32, %c128_i32 : i32
    %3 = vector.broadcast %2 : i32 to vector<1x128xi32>
    %4 = arith.remsi %0, %3 : vector<1x128xi32>
    %c0_i32_0 = arith.constant 0 : i32
    %5 = vector.broadcast %c0_i32_0 : i32 to vector<1x128xi32>
    %6 = arith.cmpi ne, %4, %5 : vector<1x128xi32>
    %c0_i32_1 = arith.constant 0 : i32
    %7 = vector.broadcast %c0_i32_1 : i32 to vector<1x128xi32>
    %8 = arith.cmpi slt, %4, %7 : vector<1x128xi32>
    %c0_i32_2 = arith.constant 0 : i32
    %9 = arith.cmpi slt, %2, %c0_i32_2 : i32
    %10 = vector.broadcast %9 : i1 to vector<1x128xi1>
    %11 = vector.broadcast %10 : vector<1x128xi1> to vector<1x128xi1>
    %12 = arith.xori %8, %11 : vector<1x128xi1>
    %13 = arith.andi %12, %6 : vector<1x128xi1>
    %14 = vector.broadcast %2 : i32 to vector<1x128xi32>
    %15 = arith.addi %4, %14 : vector<1x128xi32>
    %16 = arith.select %13, %15, %4 : vector<1x128xi1>, vector<1x128xi32>
    %c16_i32 = arith.constant 16 : i32
    %17 = vector.broadcast %c16_i32 : i32 to vector<1x128xi32>
    %18 = arith.cmpi slt, %16, %17 : vector<1x128xi32>
    %19 = arith.extui %18 : vector<1x128xi1> to vector<1x128xi32>
    %20 = arith.sitofp %19 : vector<1x128xi32> to vector<1x128xf32>
    %c0 = arith.constant 0 : index
    %c0_3 = arith.constant 0 : index
    %21 = vector.load %arg1[%c0, %c0_3] : memref<8x128xf32, #tpu.memory_space<vmem>>, vector<8x128xf32>
    %c0_4 = arith.constant 0 : index
    %22 = memref.load %arg18[%c0_4] : memref<9xf32, #tpu.memory_space<smem>>
    %c1 = arith.constant 1 : index
    %23 = memref.load %arg18[%c1] : memref<9xf32, #tpu.memory_space<smem>>
    %c2 = arith.constant 2 : index
    %24 = memref.load %arg18[%c2] : memref<9xf32, #tpu.memory_space<smem>>
    %c1_i32_5 = arith.constant 1 : i32
    %25 = tpu.dynamic_rotate %21 by %c1_i32_5 dim 1 : vector<8x128xf32>, i32 -> vector<8x128xf32>
    %26 = arith.truncf %25 : vector<8x128xf32> to vector<8x128xbf16>
    %27 = arith.truncf %21 : vector<8x128xf32> to vector<8x128xbf16>
    %28 = tpu.concatenate %26, %27 in 0 : vector<8x128xbf16>, vector<8x128xbf16> -> vector<16x128xbf16>
    %c0_6 = arith.constant 0 : index
    %c0_7 = arith.constant 0 : index
    %29 = vector.load %arg2[%c0_6, %c0_7] : memref<8x16xbf16, #tpu.memory_space<vmem>>, vector<8x16xbf16>
    %cst = arith.constant dense<0.000000e+00> : vector<8x128xf32>
    %30 = tpu.matmul %29, %28, %cst {dimension_numbers = #tpu.dot_dimension_numbers<[1], [0], [0], [1], [0, 0, 1, 1], [], []>} : vector<8x16xbf16>, vector<16x128xbf16>, vector<8x128xf32> -> vector<8x128xf32>
    %c0_8 = arith.constant 0 : index
    %c0_9 = arith.constant 0 : index
    %31 = vector.load %arg3[%c0_8, %c0_9] : memref<8x1xf32, #tpu.memory_space<vmem>>, vector<8x1xf32>
    %32 = vector.broadcast %31 : vector<8x1xf32> to vector<8x128xf32>
    %33 = arith.addf %30, %32 : vector<8x128xf32>
    %cst_10 = arith.constant 0.000000e+00 : f32
    %34 = vector.broadcast %cst_10 : f32 to vector<8x128xf32>
    %35 = arith.cmpf ogt, %33, %34 : vector<8x128xf32>
    %36 = vector.broadcast %22 : f32 to vector<8x128xf32>
    %37 = arith.mulf %36, %33 : vector<8x128xf32>
    %38 = arith.select %35, %33, %37 : vector<8x128xi1>, vector<8x128xf32>
    %39 = vector.broadcast %20 : vector<1x128xf32> to vector<8x128xf32>
    %40 = arith.mulf %38, %39 : vector<8x128xf32>
    %c1_i32_11 = arith.constant 1 : i32
    %41 = tpu.dynamic_rotate %40 by %c1_i32_11 dim 1 : vector<8x128xf32>, i32 -> vector<8x128xf32>
    %42 = arith.truncf %41 : vector<8x128xf32> to vector<8x128xbf16>
    %43 = arith.truncf %40 : vector<8x128xf32> to vector<8x128xbf16>
    %44 = tpu.concatenate %42, %43 in 0 : vector<8x128xbf16>, vector<8x128xbf16> -> vector<16x128xbf16>
    %c0_12 = arith.constant 0 : index
    %c0_13 = arith.constant 0 : index
    %45 = vector.load %arg4[%c0_12, %c0_13] : memref<8x16xbf16, #tpu.memory_space<vmem>>, vector<8x16xbf16>
    %cst_14 = arith.constant dense<0.000000e+00> : vector<8x128xf32>
    %46 = tpu.matmul %45, %44, %cst_14 {dimension_numbers = #tpu.dot_dimension_numbers<[1], [0], [0], [1], [0, 0, 1, 1], [], []>} : vector<8x16xbf16>, vector<16x128xbf16>, vector<8x128xf32> -> vector<8x128xf32>
    %c0_15 = arith.constant 0 : index
    %c0_16 = arith.constant 0 : index
    %47 = vector.load %arg5[%c0_15, %c0_16] : memref<8x1xf32, #tpu.memory_space<vmem>>, vector<8x1xf32>
    %48 = vector.broadcast %47 : vector<8x1xf32> to vector<8x128xf32>
    %49 = arith.addf %46, %48 : vector<8x128xf32>
    %cst_17 = arith.constant 0.000000e+00 : f32
    %50 = vector.broadcast %cst_17 : f32 to vector<8x128xf32>
    %51 = arith.cmpf ogt, %49, %50 : vector<8x128xf32>
    %52 = vector.broadcast %23 : f32 to vector<8x128xf32>
    %53 = arith.mulf %52, %49 : vector<8x128xf32>
    %54 = arith.select %51, %49, %53 : vector<8x128xi1>, vector<8x128xf32>
    %c0_18 = arith.constant 0 : index
    %c0_19 = arith.constant 0 : index
    %55 = vector.load %arg6[%c0_18, %c0_19] : memref<8x8xbf16, #tpu.memory_space<vmem>>, vector<8x8xbf16>
    %56 = arith.truncf %21 : vector<8x128xf32> to vector<8x128xbf16>
    %cst_20 = arith.constant dense<0.000000e+00> : vector<8x128xf32>
    %57 = tpu.matmul %55, %56, %cst_20 {dimension_numbers = #tpu.dot_dimension_numbers<[1], [0], [0], [1], [0, 0, 1, 1], [], []>} : vector<8x8xbf16>, vector<8x128xbf16>, vector<8x128xf32> -> vector<8x128xf32>
    %c0_21 = arith.constant 0 : index
    %c0_22 = arith.constant 0 : index
    %58 = vector.load %arg7[%c0_21, %c0_22] : memref<8x1xf32, #tpu.memory_space<vmem>>, vector<8x1xf32>
    %59 = vector.broadcast %58 : vector<8x1xf32> to vector<8x128xf32>
    %60 = arith.addf %57, %59 : vector<8x128xf32>
    %61 = arith.addf %54, %60 : vector<8x128xf32>
    %cst_23 = arith.constant 0.000000e+00 : f32
    %62 = vector.broadcast %cst_23 : f32 to vector<8x128xf32>
    %63 = arith.cmpf ogt, %61, %62 : vector<8x128xf32>
    %64 = vector.broadcast %24 : f32 to vector<8x128xf32>
    %65 = arith.mulf %64, %61 : vector<8x128xf32>
    %66 = arith.select %63, %61, %65 : vector<8x128xi1>, vector<8x128xf32>
    %67 = vector.broadcast %20 : vector<1x128xf32> to vector<8x128xf32>
    %68 = arith.mulf %66, %67 : vector<8x128xf32>
    %c3 = arith.constant 3 : index
    %69 = memref.load %arg18[%c3] : memref<9xf32, #tpu.memory_space<smem>>
    %c4 = arith.constant 4 : index
    %70 = memref.load %arg18[%c4] : memref<9xf32, #tpu.memory_space<smem>>
    %c5 = arith.constant 5 : index
    %71 = memref.load %arg18[%c5] : memref<9xf32, #tpu.memory_space<smem>>
    %c2_i32 = arith.constant 2 : i32
    %72 = tpu.dynamic_rotate %68 by %c2_i32 dim 1 : vector<8x128xf32>, i32 -> vector<8x128xf32>
    %73 = arith.truncf %72 : vector<8x128xf32> to vector<8x128xbf16>
    %74 = arith.truncf %68 : vector<8x128xf32> to vector<8x128xbf16>
    %75 = tpu.concatenate %73, %74 in 0 : vector<8x128xbf16>, vector<8x128xbf16> -> vector<16x128xbf16>
    %c0_24 = arith.constant 0 : index
    %c0_25 = arith.constant 0 : index
    %76 = vector.load %arg8[%c0_24, %c0_25] : memref<16x16xbf16, #tpu.memory_space<vmem>>, vector<16x16xbf16>
    %cst_26 = arith.constant dense<0.000000e+00> : vector<16x128xf32>
    %77 = tpu.matmul %76, %75, %cst_26 {dimension_numbers = #tpu.dot_dimension_numbers<[1], [0], [0], [1], [0, 0, 1, 1], [], []>} : vector<16x16xbf16>, vector<16x128xbf16>, vector<16x128xf32> -> vector<16x128xf32>
    %c0_27 = arith.constant 0 : index
    %c0_28 = arith.constant 0 : index
    %78 = vector.load %arg9[%c0_27, %c0_28] : memref<16x1xf32, #tpu.memory_space<vmem>>, vector<16x1xf32>
    %79 = vector.broadcast %78 : vector<16x1xf32> to vector<16x128xf32>
    %80 = arith.addf %77, %79 : vector<16x128xf32>
    %cst_29 = arith.constant 0.000000e+00 : f32
    %81 = vector.broadcast %cst_29 : f32 to vector<16x128xf32>
    %82 = arith.cmpf ogt, %80, %81 : vector<16x128xf32>
    %83 = vector.broadcast %69 : f32 to vector<16x128xf32>
    %84 = arith.mulf %83, %80 : vector<16x128xf32>
    %85 = arith.select %82, %80, %84 : vector<16x128xi1>, vector<16x128xf32>
    %86 = vector.broadcast %20 : vector<1x128xf32> to vector<16x128xf32>
    %87 = arith.mulf %85, %86 : vector<16x128xf32>
    %c2_i32_30 = arith.constant 2 : i32
    %88 = tpu.dynamic_rotate %87 by %c2_i32_30 dim 1 : vector<16x128xf32>, i32 -> vector<16x128xf32>
    %89 = arith.truncf %88 : vector<16x128xf32> to vector<16x128xbf16>
    %90 = arith.truncf %87 : vector<16x128xf32> to vector<16x128xbf16>
    %91 = tpu.concatenate %89, %90 in 0 : vector<16x128xbf16>, vector<16x128xbf16> -> vector<32x128xbf16>
    %c0_31 = arith.constant 0 : index
    %c0_32 = arith.constant 0 : index
    %92 = vector.load %arg10[%c0_31, %c0_32] : memref<16x32xbf16, #tpu.memory_space<vmem>>, vector<16x32xbf16>
    %cst_33 = arith.constant dense<0.000000e+00> : vector<16x128xf32>
    %93 = tpu.matmul %92, %91, %cst_33 {dimension_numbers = #tpu.dot_dimension_numbers<[1], [0], [0], [1], [0, 0, 1, 1], [], []>} : vector<16x32xbf16>, vector<32x128xbf16>, vector<16x128xf32> -> vector<16x128xf32>
    %c0_34 = arith.constant 0 : index
    %c0_35 = arith.constant 0 : index
    %94 = vector.load %arg11[%c0_34, %c0_35] : memref<16x1xf32, #tpu.memory_space<vmem>>, vector<16x1xf32>
    %95 = vector.broadcast %94 : vector<16x1xf32> to vector<16x128xf32>
    %96 = arith.addf %93, %95 : vector<16x128xf32>
    %cst_36 = arith.constant 0.000000e+00 : f32
    %97 = vector.broadcast %cst_36 : f32 to vector<16x128xf32>
    %98 = arith.cmpf ogt, %96, %97 : vector<16x128xf32>
    %99 = vector.broadcast %70 : f32 to vector<16x128xf32>
    %100 = arith.mulf %99, %96 : vector<16x128xf32>
    %101 = arith.select %98, %96, %100 : vector<16x128xi1>, vector<16x128xf32>
    %c0_37 = arith.constant 0 : index
    %c0_38 = arith.constant 0 : index
    %102 = vector.load %arg12[%c0_37, %c0_38] : memref<16x8xbf16, #tpu.memory_space<vmem>>, vector<16x8xbf16>
    %103 = arith.truncf %68 : vector<8x128xf32> to vector<8x128xbf16>
    %cst_39 = arith.constant dense<0.000000e+00> : vector<16x128xf32>
    %104 = tpu.matmul %102, %103, %cst_39 {dimension_numbers = #tpu.dot_dimension_numbers<[1], [0], [0], [1], [0, 0, 1, 1], [], []>} : vector<16x8xbf16>, vector<8x128xbf16>, vector<16x128xf32> -> vector<16x128xf32>
    %c0_40 = arith.constant 0 : index
    %c0_41 = arith.constant 0 : index
    %105 = vector.load %arg13[%c0_40, %c0_41] : memref<16x1xf32, #tpu.memory_space<vmem>>, vector<16x1xf32>
    %106 = vector.broadcast %105 : vector<16x1xf32> to vector<16x128xf32>
    %107 = arith.addf %104, %106 : vector<16x128xf32>
    %108 = arith.addf %101, %107 : vector<16x128xf32>
    %cst_42 = arith.constant 0.000000e+00 : f32
    %109 = vector.broadcast %cst_42 : f32 to vector<16x128xf32>
    %110 = arith.cmpf ogt, %108, %109 : vector<16x128xf32>
    %111 = vector.broadcast %71 : f32 to vector<16x128xf32>
    %112 = arith.mulf %111, %108 : vector<16x128xf32>
    %113 = arith.select %110, %108, %112 : vector<16x128xi1>, vector<16x128xf32>
    %114 = vector.broadcast %20 : vector<1x128xf32> to vector<16x128xf32>
    %115 = arith.mulf %113, %114 : vector<16x128xf32>
    %c6 = arith.constant 6 : index
    %116 = memref.load %arg18[%c6] : memref<9xf32, #tpu.memory_space<smem>>
    %c7 = arith.constant 7 : index
    %117 = memref.load %arg18[%c7] : memref<9xf32, #tpu.memory_space<smem>>
    %c8 = arith.constant 8 : index
    %118 = memref.load %arg18[%c8] : memref<9xf32, #tpu.memory_space<smem>>
    %c4_i32 = arith.constant 4 : i32
    %119 = tpu.dynamic_rotate %115 by %c4_i32 dim 1 : vector<16x128xf32>, i32 -> vector<16x128xf32>
    %120 = arith.truncf %119 : vector<16x128xf32> to vector<16x128xbf16>
    %121 = arith.truncf %115 : vector<16x128xf32> to vector<16x128xbf16>
    %122 = tpu.concatenate %120, %121 in 0 : vector<16x128xbf16>, vector<16x128xbf16> -> vector<32x128xbf16>
    %c0_43 = arith.constant 0 : index
    %c0_44 = arith.constant 0 : index
    %123 = vector.load %arg14[%c0_43, %c0_44] : memref<16x32xbf16, #tpu.memory_space<vmem>>, vector<16x32xbf16>
    %cst_45 = arith.constant dense<0.000000e+00> : vector<16x128xf32>
    %124 = tpu.matmul %123, %122, %cst_45 {dimension_numbers = #tpu.dot_dimension_numbers<[1], [0], [0], [1], [0, 0, 1, 1], [], []>} : vector<16x32xbf16>, vector<32x128xbf16>, vector<16x128xf32> -> vector<16x128xf32>
    %c0_46 = arith.constant 0 : index
    %c0_47 = arith.constant 0 : index
    %125 = vector.load %arg15[%c0_46, %c0_47] : memref<16x1xf32, #tpu.memory_space<vmem>>, vector<16x1xf32>
    %126 = vector.broadcast %125 : vector<16x1xf32> to vector<16x128xf32>
    %127 = arith.addf %124, %126 : vector<16x128xf32>
    %cst_48 = arith.constant 0.000000e+00 : f32
    %128 = vector.broadcast %cst_48 : f32 to vector<16x128xf32>
    %129 = arith.cmpf ogt, %127, %128 : vector<16x128xf32>
    %130 = vector.broadcast %116 : f32 to vector<16x128xf32>
    %131 = arith.mulf %130, %127 : vector<16x128xf32>
    %132 = arith.select %129, %127, %131 : vector<16x128xi1>, vector<16x128xf32>
    %133 = vector.broadcast %20 : vector<1x128xf32> to vector<16x128xf32>
    %134 = arith.mulf %132, %133 : vector<16x128xf32>
    %c4_i32_49 = arith.constant 4 : i32
    %135 = tpu.dynamic_rotate %134 by %c4_i32_49 dim 1 : vector<16x128xf32>, i32 -> vector<16x128xf32>
    %136 = arith.truncf %135 : vector<16x128xf32> to vector<16x128xbf16>
    %137 = arith.truncf %134 : vector<16x128xf32> to vector<16x128xbf16>
    %138 = tpu.concatenate %136, %137 in 0 : vector<16x128xbf16>, vector<16x128xbf16> -> vector<32x128xbf16>
    %c0_50 = arith.constant 0 : index
    %c0_51 = arith.constant 0 : index
    %139 = vector.load %arg16[%c0_50, %c0_51] : memref<16x32xbf16, #tpu.memory_space<vmem>>, vector<16x32xbf16>
    %cst_52 = arith.constant dense<0.000000e+00> : vector<16x128xf32>
    %140 = tpu.matmul %139, %138, %cst_52 {dimension_numbers = #tpu.dot_dimension_numbers<[1], [0], [0], [1], [0, 0, 1, 1], [], []>} : vector<16x32xbf16>, vector<32x128xbf16>, vector<16x128xf32> -> vector<16x128xf32>
    %c0_53 = arith.constant 0 : index
    %c0_54 = arith.constant 0 : index
    %141 = vector.load %arg17[%c0_53, %c0_54] : memref<16x1xf32, #tpu.memory_space<vmem>>, vector<16x1xf32>
    %142 = vector.broadcast %141 : vector<16x1xf32> to vector<16x128xf32>
    %143 = arith.addf %140, %142 : vector<16x128xf32>
    %cst_55 = arith.constant 0.000000e+00 : f32
    %144 = vector.broadcast %cst_55 : f32 to vector<16x128xf32>
    %145 = arith.cmpf ogt, %143, %144 : vector<16x128xf32>
    %146 = vector.broadcast %117 : f32 to vector<16x128xf32>
    %147 = arith.mulf %146, %143 : vector<16x128xf32>
    %148 = arith.select %145, %143, %147 : vector<16x128xi1>, vector<16x128xf32>
    %149 = arith.addf %148, %115 : vector<16x128xf32>
    %cst_56 = arith.constant 0.000000e+00 : f32
    %150 = vector.broadcast %cst_56 : f32 to vector<16x128xf32>
    %151 = arith.cmpf ogt, %149, %150 : vector<16x128xf32>
    %152 = vector.broadcast %118 : f32 to vector<16x128xf32>
    %153 = arith.mulf %152, %149 : vector<16x128xf32>
    %154 = arith.select %151, %149, %153 : vector<16x128xi1>, vector<16x128xf32>
    %155 = vector.broadcast %20 : vector<1x128xf32> to vector<16x128xf32>
    %156 = arith.mulf %154, %155 : vector<16x128xf32>
    %c0_57 = arith.constant 0 : index
    %c0_58 = arith.constant 0 : index
    %157 = vector.load %arg19[%c0_57, %c0_58] : memref<16x128xf32, #tpu.memory_space<vmem>>, vector<16x128xf32>
    tpu.vector_store %arg19[%c0_57, %c0_58], %156 {strides = array<i32>} : memref<16x128xf32, #tpu.memory_space<vmem>>, vector<16x128xf32>,
    return
  }
  func.func @transform_0(%arg0: i32) -> (i32, i32) {
    %c0_i32 = arith.constant 0 : i32
    %c0_i32_0 = arith.constant 0 : i32
    return %c0_i32, %arg0 : i32, i32
  }
  func.func @transform_1(%arg0: i32) -> (i32, i32) {
    %c0_i32 = arith.constant 0 : i32
    %c0_i32_0 = arith.constant 0 : i32
    %c0_i32_1 = arith.constant 0 : i32
    return %c0_i32, %c0_i32_0 : i32, i32
  }
  func.func @transform_2(%arg0: i32) -> (i32, i32) {
    %c0_i32 = arith.constant 0 : i32
    %c0_i32_0 = arith.constant 0 : i32
    %c0_i32_1 = arith.constant 0 : i32
    return %c0_i32, %c0_i32_0 : i32, i32
  }
  func.func @transform_3(%arg0: i32) -> (i32, i32) {
    %c0_i32 = arith.constant 0 : i32
    %c0_i32_0 = arith.constant 0 : i32
    %c0_i32_1 = arith.constant 0 : i32
    return %c0_i32, %c0_i32_0 : i32, i32
  }
  func.func @transform_4(%arg0: i32) -> (i32, i32) {
    %c0_i32 = arith.constant 0 : i32
    %c0_i32_0 = arith.constant 0 : i32
    %c0_i32_1 = arith.constant 0 : i32
    return %c0_i32, %c0_i32_0 : i32, i32
  }
  func.func @transform_5(%arg0: i32) -> (i32, i32) {
    %c0_i32 = arith.constant 0 : i32
    %c0_i32_0 = arith.constant 0 : i32
    %c0_i32_1 = arith.constant 0 : i32
    return %c0_i32, %c0_i32_0 : i32, i32
  }
  func.func @transform_6(%arg0: i32) -> (i32, i32) {
    %c0_i32 = arith.constant 0 : i32
    %c0_i32_0 = arith.constant 0 : i32
    %c0_i32_1 = arith.constant 0 : i32
    return %c0_i32, %c0_i32_0 : i32, i32
  }
  func.func @transform_7(%arg0: i32) -> (i32, i32) {
    %c0_i32 = arith.constant 0 : i32
    %c0_i32_0 = arith.constant 0 : i32
    %c0_i32_1 = arith.constant 0 : i32
    return %c0_i32, %c0_i32_0 : i32, i32
  }
  func.func @transform_8(%arg0: i32) -> (i32, i32) {
    %c0_i32 = arith.constant 0 : i32
    %c0_i32_0 = arith.constant 0 : i32
    %c0_i32_1 = arith.constant 0 : i32
    return %c0_i32, %c0_i32_0 : i32, i32
  }
  func.func @transform_9(%arg0: i32) -> (i32, i32) {
    %c0_i32 = arith.constant 0 : i32
    %c0_i32_0 = arith.constant 0 : i32
    %c0_i32_1 = arith.constant 0 : i32
    return %c0_i32, %c0_i32_0 : i32, i32
  }
  func.func @transform_10(%arg0: i32) -> (i32, i32) {
    %c0_i32 = arith.constant 0 : i32
    %c0_i32_0 = arith.constant 0 : i32
    %c0_i32_1 = arith.constant 0 : i32
    return %c0_i32, %c0_i32_0 : i32, i32
  }
  func.func @transform_11(%arg0: i32) -> (i32, i32) {
    %c0_i32 = arith.constant 0 : i32
    %c0_i32_0 = arith.constant 0 : i32
    %c0_i32_1 = arith.constant 0 : i32
    return %c0_i32, %c0_i32_0 : i32, i32
  }
  func.func @transform_12(%arg0: i32) -> (i32, i32) {
    %c0_i32 = arith.constant 0 : i32
    %c0_i32_0 = arith.constant 0 : i32
    %c0_i32_1 = arith.constant 0 : i32
    return %c0_i32, %c0_i32_0 : i32, i32
  }
  func.func @transform_13(%arg0: i32) -> (i32, i32) {
    %c0_i32 = arith.constant 0 : i32
    %c0_i32_0 = arith.constant 0 : i32
    %c0_i32_1 = arith.constant 0 : i32
    return %c0_i32, %c0_i32_0 : i32, i32
  }
  func.func @transform_14(%arg0: i32) -> (i32, i32) {
    %c0_i32 = arith.constant 0 : i32
    %c0_i32_0 = arith.constant 0 : i32
    %c0_i32_1 = arith.constant 0 : i32
    return %c0_i32, %c0_i32_0 : i32, i32
  }
  func.func @transform_15(%arg0: i32) -> (i32, i32) {
    %c0_i32 = arith.constant 0 : i32
    %c0_i32_0 = arith.constant 0 : i32
    %c0_i32_1 = arith.constant 0 : i32
    return %c0_i32, %c0_i32_0 : i32, i32
  }
  func.func @transform_16(%arg0: i32) -> (i32, i32) {
    %c0_i32 = arith.constant 0 : i32
    %c0_i32_0 = arith.constant 0 : i32
    %c0_i32_1 = arith.constant 0 : i32
    return %c0_i32, %c0_i32_0 : i32, i32
  }
  func.func @transform_17(%arg0: i32) -> i32 {
    %c0_i32 = arith.constant 0 : i32
    %c0_i32_0 = arith.constant 0 : i32
    return %c0_i32 : i32
  }
  func.func @transform_18(%arg0: i32) -> (i32, i32) {
    %c0_i32 = arith.constant 0 : i32
    %c0_i32_0 = arith.constant 0 : i32
    return %c0_i32, %arg0 : i32, i32
  }
}

</mosaic_0001>

<llo_original>
// kernel: tpu_custom_call.1
$region0: #{tpu_custom_call.1}
  #allocation0 [shape = 'u32[]', space=smem, size = 0x4, offset = 0x4, fixed_abs, tag = 'smem constant byte address 0x4 - core index']
  #allocation1 [shape = 'u32[72,128]{1,0:T(1,128)}', space=vmem, size = 0x9000, scoped, tag = 'internal scratch']
  %s0 = inlined_call_operand.vmem [shape: f32[8,256], index: 0, kind: input, shape index: {}]
  %s1 = inlined_call_operand.vmem [shape: bf16[8,16], index: 1, kind: input, shape index: {}]
  %s2 = inlined_call_operand.vmem [shape: f32[8,1], index: 2, kind: input, shape index: {}]
  %s3 = inlined_call_operand.vmem [shape: bf16[8,16], index: 3, kind: input, shape index: {}]
  %s4 = inlined_call_operand.vmem [shape: f32[8,1], index: 4, kind: input, shape index: {}]
  %s5 = inlined_call_operand.vmem [shape: bf16[8,8], index: 5, kind: input, shape index: {}]
  %s6 = inlined_call_operand.vmem [shape: f32[8,1], index: 6, kind: input, shape index: {}]
  %s7 = inlined_call_operand.vmem [shape: bf16[16,16], index: 7, kind: input, shape index: {}]
  %s8 = inlined_call_operand.vmem [shape: f32[16,1], index: 8, kind: input, shape index: {}]
  %s9 = inlined_call_operand.vmem [shape: bf16[16,32], index: 9, kind: input, shape index: {}]
  %s10 = inlined_call_operand.vmem [shape: f32[16,1], index: 10, kind: input, shape index: {}]
  %s11 = inlined_call_operand.vmem [shape: bf16[16,8], index: 11, kind: input, shape index: {}]
  %s12 = inlined_call_operand.vmem [shape: f32[16,1], index: 12, kind: input, shape index: {}]
  %s13 = inlined_call_operand.vmem [shape: bf16[16,32], index: 13, kind: input, shape index: {}]
  %s14 = inlined_call_operand.vmem [shape: f32[16,1], index: 14, kind: input, shape index: {}]
  %s15 = inlined_call_operand.vmem [shape: bf16[16,32], index: 15, kind: input, shape index: {}]
  %s16 = inlined_call_operand.vmem [shape: f32[16,1], index: 16, kind: input, shape index: {}]
  %s17 = inlined_call_operand.vmem [shape: f32[9], index: 17, kind: input, shape index: {}]
  %s18 = inlined_call_operand.hbm [shape: f32[16,256], index: 18, kind: output, shape index: {}]
  %s19 = sld [smem:[#allocation0]]
  $region109: #{tpu_custom_call.1} parent=0
    _
  %s21 = ssub.s32 1, %s19
  %s22 = scalar_select 0, %s21, %s19
  $region1: #{tpu_custom_call.1} parent=0
    #allocation2 [shape = 'u8[512]{0}', space=smem, size = 0x200, scoped, tag = 'input window, operand 17, single buffered']
    #allocation3 [shape = 's32[2]{0}', space=sflag, size = 0x8, scoped, tag = 'scoped memory for tpu_custom_call.1']
    #allocation4 [shape = 's32[2]{0}', space=sflag, size = 0x8, scoped, tag = 'scoped memory for tpu_custom_call.1']
    #allocation5 [shape = 'u8[16384]{0}', space=vmem, size = 0x4000, scoped, tag = 'output window, operand 0']
    %23 = vsyncpa [#allocation4], 0
    %24 = vsyncpa [#allocation3], 0
    %s25 = scalar_lea.sflag [#allocation3], 1
    %26 = vsyncpa %s25, 0
    loop: start=0, step=1, limit=4
    $region2: #{tpu_custom_call.1} parent=1 // loop_pre_header
      _
    $region3: #{tpu_custom_call.1} parent=1 // loop_header
      %s28 = sphi 0, %s32
      %p29 = scmp.ge.s32.totalorder %s28, 4
      %s38 = sphi 0, %s40
      %s41 = sphi 0, %s38
      %s42 = sphi 0, %s41
      %s58 = sphi 0, %s42
      %s62 = sphi 0, %s62
      %s64 = sphi 0, %s62
      %s65 = sphi 0, %s64
      %s79 = sphi 0, %s65
      %s83 = sphi 0, %s83
      %s85 = sphi 0, %s83
      %s86 = sphi 0, %s85
      %s100 = sphi 0, %s86
      %s104 = sphi 0, %s104
      %s106 = sphi 0, %s104
      %s107 = sphi 0, %s106
      %s121 = sphi 0, %s107
      %s125 = sphi 0, %s125
      %s127 = sphi 0, %s125
      %s128 = sphi 0, %s127
      %s142 = sphi 0, %s128
      %s146 = sphi 0, %s146
      %s148 = sphi 0, %s146
      %s149 = sphi 0, %s148
      %s163 = sphi 0, %s149
      %s167 = sphi 0, %s167
      %s169 = sphi 0, %s167
      %s170 = sphi 0, %s169
      %s184 = sphi 0, %s170
      %s188 = sphi 0, %s188
      %s190 = sphi 0, %s188
      %s191 = sphi 0, %s190
      %s205 = sphi 0, %s191
      %s209 = sphi 0, %s209
      %s211 = sphi 0, %s209
      %s212 = sphi 0, %s211
      %s226 = sphi 0, %s212
      %s230 = sphi 0, %s230
      %s232 = sphi 0, %s230
      %s233 = sphi 0, %s232
      %s247 = sphi 0, %s233
      %s251 = sphi 0, %s251
      %s253 = sphi 0, %s251
      %s254 = sphi 0, %s253
      %s268 = sphi 0, %s254
      %s272 = sphi 0, %s272
      %s274 = sphi 0, %s272
      %s275 = sphi 0, %s274
      %s289 = sphi 0, %s275
      %s293 = sphi 0, %s293
      %s295 = sphi 0, %s293
      %s296 = sphi 0, %s295
      %s310 = sphi 0, %s296
      %s314 = sphi 0, %s314
      %s316 = sphi 0, %s314
      %s317 = sphi 0, %s316
      %s331 = sphi 0, %s317
      %s335 = sphi 0, %s335
      %s337 = sphi 0, %s335
      %s338 = sphi 0, %s337
      %s352 = sphi 0, %s338
      %s356 = sphi 0, %s356
      %s358 = sphi 0, %s356
      %s359 = sphi 0, %s358
      %s373 = sphi 0, %s359
      %s377 = sphi 0, %s377
      %s379 = sphi 0, %s377
      %s380 = sphi 0, %s379
      %s394 = sphi 0, %s380
      %s398 = sphi 0, %s398
      %s400 = sphi 0, %s398
      %s401 = sphi 0, %s400
      %s415 = sphi 0, %s401
      %s421 = sphi 0, %s423
      %s424 = sphi 0, %s421
      %s425 = sphi 0, %s424
      %s441 = sphi 0, %s425
    $region4: #{tpu_custom_call.1} parent=1 // loop_header_branch
      %31 = sbr.rel (%p29) target = $region8
    $region5: #{tpu_custom_call.1} parent=1 // loop_body
      %s33 = ssub.s32 %s28, 1
      %s34 = ssub.s32 %s28, 2
      %s35 = sadd.s32 %s28, 1
      %s36 = ssub.s32 %s28, %s35
      %p37 = scmp.eq.s32.totalorder %s36, 0
      %s39 = sadd.s32 %s38, 1
      %s40 = scalar_select %p37, %s38, %s39
      %p43 = pneg %p37
      %p44 = scmp.eq.s32.totalorder %s28, 1
      %p45 = por %p43, %p44
      %p46 = scmp.ne.s32.totalorder %s38, %s41
      %p47 = scmp.eq.s32.totalorder %s28, 0
      %p48 = por %p46, %p47
      %p49 = scmp.ne.s32.totalorder %s38, %s41
      %p50 = scmp.eq.s32.totalorder %s33, 1
      %p51 = por %p49, %p50
      %p52 = scmp.ne.s32.totalorder %s41, %s42
      %p53 = scmp.eq.s32.totalorder %s33, 0
      %p54 = por %p52, %p53
      %p55 = scmp.ne.s32.totalorder %s41, %s42
      %p56 = scmp.eq.s32.totalorder %s34, 1
      %p57 = por %p55, %p56
      %p59 = scmp.ne.s32.totalorder %s42, %s58
      %p60 = scmp.eq.s32.totalorder %s34, 0
      %p61 = por %p59, %p60
      %s63 = sadd.s32 %s62, 1
      %p66 = scmp.eq.s32.totalorder %s28, 1
      %p67 = scmp.ne.s32.totalorder %s62, %s64
      %p68 = scmp.eq.s32.totalorder %s28, 0
      %p69 = por %p67, %p68
      %p70 = scmp.ne.s32.totalorder %s62, %s64
      %p71 = scmp.eq.s32.totalorder %s33, 1
      %p72 = por %p70, %p71
      %p73 = scmp.ne.s32.totalorder %s64, %s65
      %p74 = scmp.eq.s32.totalorder %s33, 0
      %p75 = por %p73, %p74
      %p76 = scmp.ne.s32.totalorder %s64, %s65
      %p77 = scmp.eq.s32.totalorder %s34, 1
      %p78 = por %p76, %p77
      %p80 = scmp.ne.s32.totalorder %s65, %s79
      %p81 = scmp.eq.s32.totalorder %s34, 0
      %p82 = por %p80, %p81
      %s84 = sadd.s32 %s83, 1
      %p87 = scmp.eq.s32.totalorder %s28, 1
      %p88 = scmp.ne.s32.totalorder %s83, %s85
      %p89 = scmp.eq.s32.totalorder %s28, 0
      %p90 = por %p88, %p89
      %p91 = scmp.ne.s32.totalorder %s83, %s85
      %p92 = scmp.eq.s32.totalorder %s33, 1
      %p93 = por %p91, %p92
      %p94 = scmp.ne.s32.totalorder %s85, %s86
      %p95 = scmp.eq.s32.totalorder %s33, 0
      %p96 = por %p94, %p95
      %p97 = scmp.ne.s32.totalorder %s85, %s86
      %p98 = scmp.eq.s32.totalorder %s34, 1
      %p99 = por %p97, %p98
      %p101 = scmp.ne.s32.totalorder %s86, %s100
      %p102 = scmp.eq.s32.totalorder %s34, 0
      %p103 = por %p101, %p102
      %s105 = sadd.s32 %s104, 1
      %p108 = scmp.eq.s32.totalorder %s28, 1
      %p109 = scmp.ne.s32.totalorder %s104, %s106
      %p110 = scmp.eq.s32.totalorder %s28, 0
      %p111 = por %p109, %p110
      %p112 = scmp.ne.s32.totalorder %s104, %s106
      %p113 = scmp.eq.s32.totalorder %s33, 1
      %p114 = por %p112, %p113
      %p115 = scmp.ne.s32.totalorder %s106, %s107
      %p116 = scmp.eq.s32.totalorder %s33, 0
      %p117 = por %p115, %p116
      %p118 = scmp.ne.s32.totalorder %s106, %s107
      %p119 = scmp.eq.s32.totalorder %s34, 1
      %p120 = por %p118, %p119
      %p122 = scmp.ne.s32.totalorder %s107, %s121
      %p123 = scmp.eq.s32.totalorder %s34, 0
      %p124 = por %p122, %p123
      %s126 = sadd.s32 %s125, 1
      %p129 = scmp.eq.s32.totalorder %s28, 1
      %p130 = scmp.ne.s32.totalorder %s125, %s127
      %p131 = scmp.eq.s32.totalorder %s28, 0
      %p132 = por %p130, %p131
      %p133 = scmp.ne.s32.totalorder %s125, %s127
      %p134 = scmp.eq.s32.totalorder %s33, 1
      %p135 = por %p133, %p134
      %p136 = scmp.ne.s32.totalorder %s127, %s128
      %p137 = scmp.eq.s32.totalorder %s33, 0
      %p138 = por %p136, %p137
      %p139 = scmp.ne.s32.totalorder %s127, %s128
      %p140 = scmp.eq.s32.totalorder %s34, 1
      %p141 = por %p139, %p140
      %p143 = scmp.ne.s32.totalorder %s128, %s142
      %p144 = scmp.eq.s32.totalorder %s34, 0
      %p145 = por %p143, %p144
      %s147 = sadd.s32 %s146, 1
      %p150 = scmp.eq.s32.totalorder %s28, 1
      %p151 = scmp.ne.s32.totalorder %s146, %s148
      %p152 = scmp.eq.s32.totalorder %s28, 0
      %p153 = por %p151, %p152
      %p154 = scmp.ne.s32.totalorder %s146, %s148
      %p155 = scmp.eq.s32.totalorder %s33, 1
      %p156 = por %p154, %p155
      %p157 = scmp.ne.s32.totalorder %s148, %s149
      %p158 = scmp.eq.s32.totalorder %s33, 0
      %p159 = por %p157, %p158
      %p160 = scmp.ne.s32.totalorder %s148, %s149
      %p161 = scmp.eq.s32.totalorder %s34, 1
      %p162 = por %p160, %p161
      %p164 = scmp.ne.s32.totalorder %s149, %s163
      %p165 = scmp.eq.s32.totalorder %s34, 0
      %p166 = por %p164, %p165
      %s168 = sadd.s32 %s167, 1
      %p171 = scmp.eq.s32.totalorder %s28, 1
      %p172 = scmp.ne.s32.totalorder %s167, %s169
      %p173 = scmp.eq.s32.totalorder %s28, 0
      %p174 = por %p172, %p173
      %p175 = scmp.ne.s32.totalorder %s167, %s169
      %p176 = scmp.eq.s32.totalorder %s33, 1
      %p177 = por %p175, %p176
      %p178 = scmp.ne.s32.totalorder %s169, %s170
      %p179 = scmp.eq.s32.totalorder %s33, 0
      %p180 = por %p178, %p179
      %p181 = scmp.ne.s32.totalorder %s169, %s170
      %p182 = scmp.eq.s32.totalorder %s34, 1
      %p183 = por %p181, %p182
      %p185 = scmp.ne.s32.totalorder %s170, %s184
      %p186 = scmp.eq.s32.totalorder %s34, 0
      %p187 = por %p185, %p186
      %s189 = sadd.s32 %s188, 1
      %p192 = scmp.eq.s32.totalorder %s28, 1
      %p193 = scmp.ne.s32.totalorder %s188, %s190
      %p194 = scmp.eq.s32.totalorder %s28, 0
      %p195 = por %p193, %p194
      %p196 = scmp.ne.s32.totalorder %s188, %s190
      %p197 = scmp.eq.s32.totalorder %s33, 1
      %p198 = por %p196, %p197
      %p199 = scmp.ne.s32.totalorder %s190, %s191
      %p200 = scmp.eq.s32.totalorder %s33, 0
      %p201 = por %p199, %p200
      %p202 = scmp.ne.s32.totalorder %s190, %s191
      %p203 = scmp.eq.s32.totalorder %s34, 1
      %p204 = por %p202, %p203
      %p206 = scmp.ne.s32.totalorder %s191, %s205
      %p207 = scmp.eq.s32.totalorder %s34, 0
      %p208 = por %p206, %p207
      %s210 = sadd.s32 %s209, 1
      %p213 = scmp.eq.s32.totalorder %s28, 1
      %p214 = scmp.ne.s32.totalorder %s209, %s211
      %p215 = scmp.eq.s32.totalorder %s28, 0
      %p216 = por %p214, %p215
      %p217 = scmp.ne.s32.totalorder %s209, %s211
      %p218 = scmp.eq.s32.totalorder %s33, 1
      %p219 = por %p217, %p218
      %p220 = scmp.ne.s32.totalorder %s211, %s212
      %p221 = scmp.eq.s32.totalorder %s33, 0
      %p222 = por %p220, %p221
      %p223 = scmp.ne.s32.totalorder %s211, %s212
      %p224 = scmp.eq.s32.totalorder %s34, 1
      %p225 = por %p223, %p224
      %p227 = scmp.ne.s32.totalorder %s212, %s226
      %p228 = scmp.eq.s32.totalorder %s34, 0
      %p229 = por %p227, %p228
      %s231 = sadd.s32 %s230, 1
      %p234 = scmp.eq.s32.totalorder %s28, 1
      %p235 = scmp.ne.s32.totalorder %s230, %s232
      %p236 = scmp.eq.s32.totalorder %s28, 0
      %p237 = por %p235, %p236
      %p238 = scmp.ne.s32.totalorder %s230, %s232
      %p239 = scmp.eq.s32.totalorder %s33, 1
      %p240 = por %p238, %p239
      %p241 = scmp.ne.s32.totalorder %s232, %s233
      %p242 = scmp.eq.s32.totalorder %s33, 0
      %p243 = por %p241, %p242
      %p244 = scmp.ne.s32.totalorder %s232, %s233
      %p245 = scmp.eq.s32.totalorder %s34, 1
      %p246 = por %p244, %p245
      %p248 = scmp.ne.s32.totalorder %s233, %s247
      %p249 = scmp.eq.s32.totalorder %s34, 0
      %p250 = por %p248, %p249
      %s252 = sadd.s32 %s251, 1
      %p255 = scmp.eq.s32.totalorder %s28, 1
      %p256 = scmp.ne.s32.totalorder %s251, %s253
      %p257 = scmp.eq.s32.totalorder %s28, 0
      %p258 = por %p256, %p257
      %p259 = scmp.ne.s32.totalorder %s251, %s253
      %p260 = scmp.eq.s32.totalorder %s33, 1
      %p261 = por %p259, %p260
      %p262 = scmp.ne.s32.totalorder %s253, %s254
      %p263 = scmp.eq.s32.totalorder %s33, 0
      %p264 = por %p262, %p263
      %p265 = scmp.ne.s32.totalorder %s253, %s254
      %p266 = scmp.eq.s32.totalorder %s34, 1
      %p267 = por %p265, %p266
      %p269 = scmp.ne.s32.totalorder %s254, %s268
      %p270 = scmp.eq.s32.totalorder %s34, 0
      %p271 = por %p269, %p270
      %s273 = sadd.s32 %s272, 1
      %p276 = scmp.eq.s32.totalorder %s28, 1
      %p277 = scmp.ne.s32.totalorder %s272, %s274
      %p278 = scmp.eq.s32.totalorder %s28, 0
      %p279 = por %p277, %p278
      %p280 = scmp.ne.s32.totalorder %s272, %s274
      %p281 = scmp.eq.s32.totalorder %s33, 1
      %p282 = por %p280, %p281
      %p283 = scmp.ne.s32.totalorder %s274, %s275
      %p284 = scmp.eq.s32.totalorder %s33, 0
      %p285 = por %p283, %p284
      %p286 = scmp.ne.s32.totalorder %s274, %s275
      %p287 = scmp.eq.s32.totalorder %s34, 1
      %p288 = por %p286, %p287
      %p290 = scmp.ne.s32.totalorder %s275, %s289
      %p291 = scmp.eq.s32.totalorder %s34, 0
      %p292 = por %p290, %p291
      %s294 = sadd.s32 %s293, 1
      %p297 = scmp.eq.s32.totalorder %s28, 1
      %p298 = scmp.ne.s32.totalorder %s293, %s295
      %p299 = scmp.eq.s32.totalorder %s28, 0
      %p300 = por %p298, %p299
      %p301 = scmp.ne.s32.totalorder %s293, %s295
      %p302 = scmp.eq.s32.totalorder %s33, 1
      %p303 = por %p301, %p302
      %p304 = scmp.ne.s32.totalorder %s295, %s296
      %p305 = scmp.eq.s32.totalorder %s33, 0
      %p306 = por %p304, %p305
      %p307 = scmp.ne.s32.totalorder %s295, %s296
      %p308 = scmp.eq.s32.totalorder %s34, 1
      %p309 = por %p307, %p308
      %p311 = scmp.ne.s32.totalorder %s296, %s310
      %p312 = scmp.eq.s32.totalorder %s34, 0
      %p313 = por %p311, %p312
      %s315 = sadd.s32 %s314, 1
      %p318 = scmp.eq.s32.totalorder %s28, 1
      %p319 = scmp.ne.s32.totalorder %s314, %s316
      %p320 = scmp.eq.s32.totalorder %s28, 0
      %p321 = por %p319, %p320
      %p322 = scmp.ne.s32.totalorder %s314, %s316
      %p323 = scmp.eq.s32.totalorder %s33, 1
      %p324 = por %p322, %p323
      %p325 = scmp.ne.s32.totalorder %s316, %s317
      %p326 = scmp.eq.s32.totalorder %s33, 0
      %p327 = por %p325, %p326
      %p328 = scmp.ne.s32.totalorder %s316, %s317
      %p329 = scmp.eq.s32.totalorder %s34, 1
      %p330 = por %p328, %p329
      %p332 = scmp.ne.s32.totalorder %s317, %s331
      %p333 = scmp.eq.s32.totalorder %s34, 0
      %p334 = por %p332, %p333
      %s336 = sadd.s32 %s335, 1
      %p339 = scmp.eq.s32.totalorder %s28, 1
      %p340 = scmp.ne.s32.totalorder %s335, %s337
      %p341 = scmp.eq.s32.totalorder %s28, 0
      %p342 = por %p340, %p341
      %p343 = scmp.ne.s32.totalorder %s335, %s337
      %p344 = scmp.eq.s32.totalorder %s33, 1
      %p345 = por %p343, %p344
      %p346 = scmp.ne.s32.totalorder %s337, %s338
      %p347 = scmp.eq.s32.totalorder %s33, 0
      %p348 = por %p346, %p347
      %p349 = scmp.ne.s32.totalorder %s337, %s338
      %p350 = scmp.eq.s32.totalorder %s34, 1
      %p351 = por %p349, %p350
      %p353 = scmp.ne.s32.totalorder %s338, %s352
      %p354 = scmp.eq.s32.totalorder %s34, 0
      %p355 = por %p353, %p354
      %s357 = sadd.s32 %s356, 1
      %p360 = scmp.eq.s32.totalorder %s28, 1
      %p361 = scmp.ne.s32.totalorder %s356, %s358
      %p362 = scmp.eq.s32.totalorder %s28, 0
      %p363 = por %p361, %p362
      %p364 = scmp.ne.s32.totalorder %s356, %s358
      %p365 = scmp.eq.s32.totalorder %s33, 1
      %p366 = por %p364, %p365
      %p367 = scmp.ne.s32.totalorder %s358, %s359
      %p368 = scmp.eq.s32.totalorder %s33, 0
      %p369 = por %p367, %p368
      %p370 = scmp.ne.s32.totalorder %s358, %s359
      %p371 = scmp.eq.s32.totalorder %s34, 1
      %p372 = por %p370, %p371
      %p374 = scmp.ne.s32.totalorder %s359, %s373
      %p375 = scmp.eq.s32.totalorder %s34, 0
      %p376 = por %p374, %p375
      %s378 = sadd.s32 %s377, 1
      %p381 = scmp.eq.s32.totalorder %s28, 1
      %p382 = scmp.ne.s32.totalorder %s377, %s379
      %p383 = scmp.eq.s32.totalorder %s28, 0
      %p384 = por %p382, %p383
      %p385 = scmp.ne.s32.totalorder %s377, %s379
      %p386 = scmp.eq.s32.totalorder %s33, 1
      %p387 = por %p385, %p386
      %p388 = scmp.ne.s32.totalorder %s379, %s380
      %p389 = scmp.eq.s32.totalorder %s33, 0
      %p390 = por %p388, %p389
      %p391 = scmp.ne.s32.totalorder %s379, %s380
      %p392 = scmp.eq.s32.totalorder %s34, 1
      %p393 = por %p391, %p392
      %p395 = scmp.ne.s32.totalorder %s380, %s394
      %p396 = scmp.eq.s32.totalorder %s34, 0
      %p397 = por %p395, %p396
      %s399 = sadd.s32 %s398, 1
      %p402 = scmp.eq.s32.totalorder %s28, 1
      %p403 = scmp.ne.s32.totalorder %s398, %s400
      %p404 = scmp.eq.s32.totalorder %s28, 0
      %p405 = por %p403, %p404
      %p406 = scmp.ne.s32.totalorder %s398, %s400
      %p407 = scmp.eq.s32.totalorder %s33, 1
      %p408 = por %p406, %p407
      %p409 = scmp.ne.s32.totalorder %s400, %s401
      %p410 = scmp.eq.s32.totalorder %s33, 0
      %p411 = por %p409, %p410
      %p412 = scmp.ne.s32.totalorder %s400, %s401
      %p413 = scmp.eq.s32.totalorder %s34, 1
      %p414 = por %p412, %p413
      %p416 = scmp.ne.s32.totalorder %s401, %s415
      %p417 = scmp.eq.s32.totalorder %s34, 0
      %p418 = por %p416, %p417
      %s419 = ssub.s32 %s28, %s35
      %p420 = scmp.eq.s32.totalorder %s419, 0
      %s422 = sadd.s32 %s421, 1
      %s423 = scalar_select %p420, %s421, %s422
      %p426 = pneg %p420
      %p427 = scmp.eq.s32.totalorder %s28, 1
      %p428 = por %p426, %p427
      %p429 = scmp.ne.s32.totalorder %s421, %s424
      %p430 = scmp.eq.s32.totalorder %s28, 0
      %p431 = por %p429, %p430
      %p432 = scmp.ne.s32.totalorder %s421, %s424
      %p433 = scmp.eq.s32.totalorder %s33, 1
      %p434 = por %p432, %p433
      %p435 = scmp.ne.s32.totalorder %s424, %s425
      %p436 = scmp.eq.s32.totalorder %s33, 0
      %p437 = por %p435, %p436
      %p438 = scmp.ne.s32.totalorder %s424, %s425
      %p439 = scmp.eq.s32.totalorder %s34, 1
      %p440 = por %p438, %p439
      %p442 = scmp.ne.s32.totalorder %s425, %s441
      %p443 = scmp.eq.s32.totalorder %s34, 0
      %p444 = por %p442, %p443
      %p445 = scmp.le.s32.totalorder 1, %s28
      %p446 = scmp.lt.s32.totalorder %s28, 3
      %p447 = pnand %p445, %p446
      %p448 = pneg %p447
      // Predicated region
      $region9: #{tpu_custom_call.1} parent=5 // pred_check
        _
      $region10: #{tpu_custom_call.1} parent=5 // pred_check_branch
        %450 = sbr.rel (%p447) target = $region12
      $region11: #{tpu_custom_call.1} parent=5 // pred_region
        %s451 = ssub.s32 %s28, 1
        // Predicated region
        $region13: #{tpu_custom_call.1} parent=11 // pred_check
          %p452 = pneg %p75
        $region14: #{tpu_custom_call.1} parent=11 // pred_check_branch
          %454 = sbr.rel (%p452) target = $region16
        $region15: #{tpu_custom_call.1} parent=11 // pred_region
          _
        $region16: #{tpu_custom_call.1} parent=11 // pred_fallthru
          _
        // Predicated region
        $region17: #{tpu_custom_call.1} parent=11 // pred_check
          %p455 = pneg %p96
        $region18: #{tpu_custom_call.1} parent=11 // pred_check_branch
          %457 = sbr.rel (%p455) target = $region20
        $region19: #{tpu_custom_call.1} parent=11 // pred_region
          _
        $region20: #{tpu_custom_call.1} parent=11 // pred_fallthru
          _
        // Predicated region
        $region21: #{tpu_custom_call.1} parent=11 // pred_check
          %p458 = pneg %p117
        $region22: #{tpu_custom_call.1} parent=11 // pred_check_branch
          %460 = sbr.rel (%p458) target = $region24
        $region23: #{tpu_custom_call.1} parent=11 // pred_region
          _
        $region24: #{tpu_custom_call.1} parent=11 // pred_fallthru
          _
        // Predicated region
        $region25: #{tpu_custom_call.1} parent=11 // pred_check
          %p461 = pneg %p138
        $region26: #{tpu_custom_call.1} parent=11 // pred_check_branch
          %463 = sbr.rel (%p461) target = $region28
        $region27: #{tpu_custom_call.1} parent=11 // pred_region
          _
        $region28: #{tpu_custom_call.1} parent=11 // pred_fallthru
          _
        // Predicated region
        $region29: #{tpu_custom_call.1} parent=11 // pred_check
          %p464 = pneg %p159
        $region30: #{tpu_custom_call.1} parent=11 // pred_check_branch
          %466 = sbr.rel (%p464) target = $region32
        $region31: #{tpu_custom_call.1} parent=11 // pred_region
          _
        $region32: #{tpu_custom_call.1} parent=11 // pred_fallthru
          _
        // Predicated region
        $region33: #{tpu_custom_call.1} parent=11 // pred_check
          %p467 = pneg %p180
        $region34: #{tpu_custom_call.1} parent=11 // pred_check_branch
          %469 = sbr.rel (%p467) target = $region36
        $region35: #{tpu_custom_call.1} parent=11 // pred_region
          _
        $region36: #{tpu_custom_call.1} parent=11 // pred_fallthru
          _
        // Predicated region
        $region37: #{tpu_custom_call.1} parent=11 // pred_check
          %p470 = pneg %p201
        $region38: #{tpu_custom_call.1} parent=11 // pred_check_branch
          %472 = sbr.rel (%p470) target = $region40
        $region39: #{tpu_custom_call.1} parent=11 // pred_region
          _
        $region40: #{tpu_custom_call.1} parent=11 // pred_fallthru
          _
        // Predicated region
        $region41: #{tpu_custom_call.1} parent=11 // pred_check
          %p473 = pneg %p222
        $region42: #{tpu_custom_call.1} parent=11 // pred_check_branch
          %475 = sbr.rel (%p473) target = $region44
        $region43: #{tpu_custom_call.1} parent=11 // pred_region
          _
        $region44: #{tpu_custom_call.1} parent=11 // pred_fallthru
          _
        // Predicated region
        $region45: #{tpu_custom_call.1} parent=11 // pred_check
          %p476 = pneg %p243
        $region46: #{tpu_custom_call.1} parent=11 // pred_check_branch
          %478 = sbr.rel (%p476) target = $region48
        $region47: #{tpu_custom_call.1} parent=11 // pred_region
          _
        $region48: #{tpu_custom_call.1} parent=11 // pred_fallthru
          _
        // Predicated region
        $region49: #{tpu_custom_call.1} parent=11 // pred_check
          %p479 = pneg %p264
        $region50: #{tpu_custom_call.1} parent=11 // pred_check_branch
          %481 = sbr.rel (%p479) target = $region52
        $region51: #{tpu_custom_call.1} parent=11 // pred_region
          _
        $region52: #{tpu_custom_call.1} parent=11 // pred_fallthru
          _
        // Predicated region
        $region53: #{tpu_custom_call.1} parent=11 // pred_check
          %p482 = pneg %p285
        $region54: #{tpu_custom_call.1} parent=11 // pred_check_branch
          %484 = sbr.rel (%p482) target = $region56
        $region55: #{tpu_custom_call.1} parent=11 // pred_region
          _
        $region56: #{tpu_custom_call.1} parent=11 // pred_fallthru
          _
        // Predicated region
        $region57: #{tpu_custom_call.1} parent=11 // pred_check
          %p485 = pneg %p306
        $region58: #{tpu_custom_call.1} parent=11 // pred_check_branch
          %487 = sbr.rel (%p485) target = $region60
        $region59: #{tpu_custom_call.1} parent=11 // pred_region
          _
        $region60: #{tpu_custom_call.1} parent=11 // pred_fallthru
          _
        // Predicated region
        $region61: #{tpu_custom_call.1} parent=11 // pred_check
          %p488 = pneg %p327
        $region62: #{tpu_custom_call.1} parent=11 // pred_check_branch
          %490 = sbr.rel (%p488) target = $region64
        $region63: #{tpu_custom_call.1} parent=11 // pred_region
          _
        $region64: #{tpu_custom_call.1} parent=11 // pred_fallthru
          _
        // Predicated region
        $region65: #{tpu_custom_call.1} parent=11 // pred_check
          %p491 = pneg %p348
        $region66: #{tpu_custom_call.1} parent=11 // pred_check_branch
          %493 = sbr.rel (%p491) target = $region68
        $region67: #{tpu_custom_call.1} parent=11 // pred_region
          _
        $region68: #{tpu_custom_call.1} parent=11 // pred_fallthru
          _
        // Predicated region
        $region69: #{tpu_custom_call.1} parent=11 // pred_check
          %p494 = pneg %p369
        $region70: #{tpu_custom_call.1} parent=11 // pred_check_branch
          %496 = sbr.rel (%p494) target = $region72
        $region71: #{tpu_custom_call.1} parent=11 // pred_region
          _
        $region72: #{tpu_custom_call.1} parent=11 // pred_fallthru
          _
        // Predicated region
        $region73: #{tpu_custom_call.1} parent=11 // pred_check
          %p497 = pneg %p390
        $region74: #{tpu_custom_call.1} parent=11 // pred_check_branch
          %499 = sbr.rel (%p497) target = $region76
        $region75: #{tpu_custom_call.1} parent=11 // pred_region
          _
        $region76: #{tpu_custom_call.1} parent=11 // pred_fallthru
          _
        // Predicated region
        $region77: #{tpu_custom_call.1} parent=11 // pred_check
          %p500 = pneg %p411
        $region78: #{tpu_custom_call.1} parent=11 // pred_check_branch
          %502 = sbr.rel (%p500) target = $region80
        $region79: #{tpu_custom_call.1} parent=11 // pred_region
          %504 = vsyncadd [#allocation4], 0
          %s506 = sshll.u32 %s17, 4
          %s507 = int_to_ptr.vmem [resolvable:$true] %s506
          %509 = dma.vmem_to_smem %s507, 16, [#allocation2], [#allocation4]
        $region80: #{tpu_custom_call.1} parent=11 // pred_fallthru
          _
      $region12: #{tpu_custom_call.1} parent=5 // pred_fallthru
        _
      %p510 = scmp.lt.s32.totalorder %s28, 2
      // Predicated region
      $region81: #{tpu_custom_call.1} parent=5 // pred_check
        %p511 = pneg %p510
      $region82: #{tpu_custom_call.1} parent=5 // pred_check_branch
        %513 = sbr.rel (%p511) target = $region84
      $region83: #{tpu_custom_call.1} parent=5 // pred_region
        // Predicated region
        $region85: #{tpu_custom_call.1} parent=83 // pred_check
          %p514 = pneg %p48
        $region86: #{tpu_custom_call.1} parent=83 // pred_check_branch
          %516 = sbr.rel (%p514) target = $region88
        $region87: #{tpu_custom_call.1} parent=83 // pred_region
          %p517 = scmp.lt.s32.totalorder %s28, 1
          %s518 = scalar_select %p517, %s28, 1
          %s519 = smul.addr %s518, 8
          %s520 = scalar_lea.vmem %s0, %s519
        $region88: #{tpu_custom_call.1} parent=83 // pred_fallthru
          _
      $region84: #{tpu_custom_call.1} parent=5 // pred_fallthru
        _
      %p521 = scmp.le.s32.totalorder 1, %s28
      %p522 = scmp.lt.s32.totalorder %s28, 3
      %p523 = pnand %p521, %p522
      %p524 = pneg %p523
      // Predicated region
      $region89: #{tpu_custom_call.1} parent=5 // pred_check
        _
      $region90: #{tpu_custom_call.1} parent=5 // pred_check_branch
        %526 = sbr.rel (%p523) target = $region92
      $region91: #{tpu_custom_call.1} parent=5 // pred_region
        %s527 = ssub.s32 %s28, 1
        // Predicated region
        $region93: #{tpu_custom_call.1} parent=91 // pred_check
          %p528 = pneg %p411
        $region94: #{tpu_custom_call.1} parent=91 // pred_check_branch
          %530 = sbr.rel (%p528) target = $region96
        $region95: #{tpu_custom_call.1} parent=91 // pred_region
          %532 = dma.done [#allocation4], 16
        $region96: #{tpu_custom_call.1} parent=91 // pred_fallthru
          _
        %533 = sfence
        %p534 = scmp.lt.s32.totalorder %s33, 1
        %s535 = scalar_select %p534, %s33, 1
        %s536 = smul.addr %s535, 8
        %s537 = scalar_lea.vmem %s0, %s536
        %p538 = pneg %p54
        %p539 = pneg %p51
        %p540 = pneg %p75
        %p541 = pneg %p72
        %p542 = pneg %p96
        %p543 = pneg %p93
        %p544 = pneg %p117
        %p545 = pneg %p114
        %p546 = pneg %p138
        %p547 = pneg %p135
        %p548 = pneg %p159
        %p549 = pneg %p156
        %p550 = pneg %p180
        %p551 = pneg %p177
        %p552 = pneg %p201
        %p553 = pneg %p198
        %p554 = pneg %p222
        %p555 = pneg %p219
        %p556 = pneg %p243
        %p557 = pneg %p240
        %p558 = pneg %p264
        %p559 = pneg %p261
        %p560 = pneg %p285
        %p561 = pneg %p282
        %p562 = pneg %p306
        %p563 = pneg %p303
        %p564 = pneg %p327
        %p565 = pneg %p324
        %p566 = pneg %p348
        %p567 = pneg %p345
        %p568 = pneg %p369
        %p569 = pneg %p366
        %p570 = pneg %p390
        %p571 = pneg %p387
        %p572 = pneg %p411
        %p573 = pneg %p408
        %p574 = pneg %p437
        %p575 = pneg %p434
        %s576 = sand.u32 %s424, 1
        %s577 = scalar_lea.sflag [#allocation3], %s576
        %s578 = sand.u32 %s424, 1
        %s579 = smul.addr %s578, 16
        %s580 = scalar_lea.vmem [#allocation5], %s579
        %p581 = scmp.lt.s32.totalorder %s33, 1
        %s582 = scalar_select %p581, %s33, 1
        %s583 = smul.addr %s582, 8
        %s584 = scalar_lea.vmem %s0, %s583
        %v586 = vlaneseq
        %v587 = vand.u32 %v586, 127
        %vm588 = vcmp.lt.s32.totalorder %v587, 0
        %v589 = vsub.s32 0, %v587
        %v590 = vsel %vm588, %v589, %v587
        %v591 = vshrl.u32 %v590, 7
        %v592 = vand.u32 %v590, 127
        %v593 = vsub.s32 0, %v592
        %v594 = vsel %vm588, %v593, %v592
        %vm595 = vcmp.ne.s32.totalorder %v594, 0
        %vm596 = vcmp.lt.s32.totalorder %v594, 0
        %vm597 = vmand %vm596, %vm595
        %v598 = vadd.s32 %v594, 128
        %v599 = vsel %vm597, %v598, %v594
        %vm600 = vcmp.lt.s32.totalorder %v599, 16
        %v601 = vsel %vm600, 1, 0
        %v602 = vcvt.s32.f32 %v601
        %v603 = vld [vmem:[%s584] sm:$0xff]
        %s604 = sld [smem:[#allocation2]]
        %s605 = sld [smem:[#allocation2 + $0x1]]
        %s606 = sld [smem:[#allocation2 + $0x2]]
        %607 = vrot.lane.b32.xlu0 %v603, 1
        %v608 = vpop.permute.xlu0 %607
        %v609 = vpack.c.bf16 %v608, %v608
        %v610 = vpack.c.bf16 %v603, %v603
        %v612 = vunpack.c.l.b16 %v610
        %v613 = vpack.c.b16 %v612, %v612
        %vm614 = vcmask 1043456
        %v617 = vsel %vm614, %v609, %v613
        %v619 = vld [vmem:[%s1] sm:$0xf]
        %v620 = vld [vmem:[%s2] sm:$0xff]
        %622 = vset.pattern.permute.xlu0 0
        %623 = vperm.xlu0 %622, %v620
        %v624 = vpop.permute.xlu0 %623
        %vm626 = vcmask 130048
        %v628 = vsel %vm626, %v619, 0
        %630 = vmatpush.bf16.msra.mxu0 0
        %631 = vmatpush.bf16.msra.mxu0 0
        %632 = vmatpush.bf16.msra.mxu0 0
        %633 = vmatpush.bf16.msra.mxu0 0
        %634 = vmatpush.bf16.msra.mxu0 0
        %635 = vmatpush.bf16.msra.mxu0 0
        %636 = vmatpush.bf16.msra.mxu0 0
        %637 = vmatpush.bf16.msra.mxu0 %v617
        %638 = vmatmul.bf16.gmra.mxu0 %v628
        %v639 = vpop.f32.mrf.mxu0
        %v640 = vadd.f32 %v624, %v639
        %v641 = vpop.f32.mrf.mxu0
        %642 = vdwg.mxu0
        %vm643 = vcmp.gt.f32.partialorder %v640, 0.0
        %v644 = vstv %s604
        %v645 = vmul.f32 %v644, %v640
        %v646 = vsel %vm643, %v640, %v645
        %v647 = vmul.f32 %v646, %v602
        %648 = vrot.lane.b32.xlu0 %v647, 1
        %v649 = vpop.permute.xlu0 %648
        %v650 = vpack.c.bf16 %v649, %v649
        %v651 = vpack.c.bf16 %v647, %v647
        %v653 = vunpack.c.l.b16 %v651
        %v654 = vpack.c.b16 %v653, %v653
        %v657 = vsel %vm614, %v650, %v654
        %v659 = vld [vmem:[%s3] sm:$0xf]
        %v660 = vld [vmem:[%s4] sm:$0xff]
        %662 = vset.pattern.permute.xlu0 0
        %663 = vperm.xlu0 %662, %v660
        %v664 = vpop.permute.xlu0 %663
        %v667 = vsel %vm626, %v659, 0
        %669 = vmatpush.bf16.msra.mxu0 0
        %670 = vmatpush.bf16.msra.mxu0 0
        %671 = vmatpush.bf16.msra.mxu0 0
        %672 = vmatpush.bf16.msra.mxu0 0
        %673 = vmatpush.bf16.msra.mxu0 0
        %674 = vmatpush.bf16.msra.mxu0 0
        %675 = vmatpush.bf16.msra.mxu0 0
        %676 = vmatpush.bf16.msra.mxu0 %v657
        %677 = vmatmul.bf16.gmra.mxu0 %v667
        %v678 = vpop.f32.mrf.mxu0
        %v679 = vadd.f32 %v664, %v678
        %v680 = vpop.f32.mrf.mxu0
        %681 = vdwg.mxu0
        %vm682 = vcmp.gt.f32.partialorder %v679, 0.0
        %v683 = vstv %s605
        %v684 = vmul.f32 %v683, %v679
        %v685 = vsel %vm682, %v679, %v684
        %v686 = vld [vmem:[%s5] sm:$0xf]
        %v687 = vld [vmem:[%s6] sm:$0xff]
        %689 = vset.pattern.permute.xlu0 0
        %690 = vperm.xlu0 %689, %v687
        %v691 = vpop.permute.xlu0 %690
        %vm693 = vcmask 64512
        %v695 = vsel %vm693, %v686, 0
        %v698 = vsel %vm614, %v610, 0
        %700 = vmatpush.bf16.msra.mxu0 0
        %701 = vmatpush.bf16.msra.mxu0 0
        %702 = vmatpush.bf16.msra.mxu0 0
        %703 = vmatpush.bf16.msra.mxu0 0
        %704 = vmatpush.bf16.msra.mxu0 0
        %705 = vmatpush.bf16.msra.mxu0 0
        %706 = vmatpush.bf16.msra.mxu0 0
        %707 = vmatpush.bf16.msra.mxu0 %v698
        %708 = vmatmul.bf16.gmra.mxu0 %v695
        %v709 = vpop.f32.mrf.mxu0
        %v710 = vadd.f32 %v691, %v709
        %v711 = vpop.f32.mrf.mxu0
        %712 = vdwg.mxu0
        %v713 = vadd.f32 %v685, %v710
        %vm714 = vcmp.gt.f32.partialorder %v713, 0.0
        %v715 = vstv %s606
        %v716 = vmul.f32 %v715, %v713
        %v717 = vsel %vm714, %v713, %v716
        %v718 = vmul.f32 %v717, %v602
        %s719 = sld [smem:[#allocation2 + $0x3]]
        %s720 = sld [smem:[#allocation2 + $0x4]]
        %s721 = sld [smem:[#allocation2 + $0x5]]
        %722 = vrot.lane.b32.xlu0 %v718, 2
        %v723 = vpop.permute.xlu0 %722
        %v724 = vpack.c.bf16 %v723, %v723
        %v725 = vpack.c.bf16 %v718, %v718
        %v727 = vunpack.c.l.b16 %v725
        %v728 = vpack.c.b16 %v727, %v727
        %v731 = vsel %vm614, %v724, %v728
        %v733 = vld [vmem:[%s7] sm:$0xf]
        %v734 = vld [vmem:[%s7 + $0x4] sm:$0xf]
        %v735 = vld [vmem:[%s8] sm:$0xff]
        %v736 = vld [vmem:[%s8 + $0x8] sm:$0xff]
        %738 = vset.pattern.permute.xlu0 0
        %739 = vperm.xlu0 %738, %v735
        %v740 = vpop.permute.xlu0 %739
        %743 = vset.pattern.permute.xlu0 0
        %744 = vperm.xlu0 %743, %v736
        %v745 = vpop.permute.xlu0 %744
        %v749 = vunpack.c.l.b16 %v733
        %v750 = vunpack.c.l.b16 %v734
        %v751 = vpack.c.b16 %v750, %v749
        %v753 = vsel %vm626, %v751, 0
        %755 = vmatpush.bf16.msra.mxu0 0
        %756 = vmatpush.bf16.msra.mxu0 0
        %757 = vmatpush.bf16.msra.mxu0 0
        %758 = vmatpush.bf16.msra.mxu0 0
        %759 = vmatpush.bf16.msra.mxu0 0
        %760 = vmatpush.bf16.msra.mxu0 0
        %761 = vmatpush.bf16.msra.mxu0 0
        %762 = vmatpush.bf16.msra.mxu0 %v731
        %763 = vmatmul.bf16.gmra.mxu0 %v753
        %v764 = vpop.f32.mrf.mxu0
        %v765 = vadd.f32 %v740, %v764
        %v766 = vpop.f32.mrf.mxu0
        %v767 = vadd.f32 %v745, %v766
        %768 = vdwg.mxu0
        %vm769 = vcmp.gt.f32.partialorder %v765, 0.0
        %vm770 = vcmp.gt.f32.partialorder %v767, 0.0
        %v771 = vstv %s719
        %v772 = vmul.f32 %v771, %v765
        %v773 = vmul.f32 %v771, %v767
        %v774 = vsel %vm769, %v765, %v772
        %v775 = vsel %vm770, %v767, %v773
        %v776 = vmul.f32 %v774, %v602
        %v777 = vmul.f32 %v775, %v602
        %778 = vrot.lane.b32.xlu0 %v776, 2
        %v779 = vpop.permute.xlu0 %778
        %780 = vrot.lane.b32.xlu0 %v777, 2
        %v781 = vpop.permute.xlu0 %780
        %v782 = vpack.c.bf16 %v779, %v779
        %v783 = vpack.c.bf16 %v781, %v781
        %v784 = vpack.c.bf16 %v776, %v776
        %v785 = vpack.c.bf16 %v777, %v777
        %v788 = vunpack.c.l.b16 %v782
        %v789 = vunpack.c.l.b16 %v783
        %v790 = vpack.c.b16 %v789, %v788
        %v794 = vunpack.c.l.b16 %v784
        %v795 = vunpack.c.l.b16 %v785
        %v796 = vpack.c.b16 %v795, %v794
        %v798 = vld [vmem:[%s9] sm:$0xf]
        %v799 = vld [vmem:[%s9 + $0x4] sm:$0xf]
        %v800 = vld [vmem:[%s10] sm:$0xff]
        %v801 = vld [vmem:[%s10 + $0x8] sm:$0xff]
        %803 = vset.pattern.permute.xlu0 0
        %804 = vperm.xlu0 %803, %v800
        %v805 = vpop.permute.xlu0 %804
        %808 = vset.pattern.permute.xlu0 0
        %809 = vperm.xlu0 %808, %v801
        %v810 = vpop.permute.xlu0 %809
        %v814 = vunpack.c.l.b16 %v798
        %v815 = vunpack.c.l.b16 %v799
        %v816 = vpack.c.b16 %v815, %v814
        %vm817 = vcmask 261120
        %v819 = vsel %vm817, %v816, 0
        %821 = vmatpush.bf16.msra.mxu0 0
        %822 = vmatpush.bf16.msra.mxu0 0
        %823 = vmatpush.bf16.msra.mxu0 0
        %824 = vmatpush.bf16.msra.mxu0 0
        %825 = vmatpush.bf16.msra.mxu0 0
        %826 = vmatpush.bf16.msra.mxu0 0
        %827 = vmatpush.bf16.msra.mxu0 %v796
        %828 = vmatpush.bf16.msra.mxu0 %v790
        %829 = vmatmul.bf16.gmra.mxu0 %v819
        %v830 = vpop.f32.mrf.mxu0
        %v831 = vadd.f32 %v805, %v830
        %v832 = vpop.f32.mrf.mxu0
        %v833 = vadd.f32 %v810, %v832
        %834 = vdwg.mxu0
        %vm835 = vcmp.gt.f32.partialorder %v831, 0.0
        %vm836 = vcmp.gt.f32.partialorder %v833, 0.0
        %v837 = vstv %s720
        %v838 = vmul.f32 %v837, %v831
        %v839 = vmul.f32 %v837, %v833
        %v840 = vsel %vm835, %v831, %v838
        %v841 = vsel %vm836, %v833, %v839
        %v842 = vld [vmem:[%s11] sm:$0xf]
        %v843 = vld [vmem:[%s11 + $0x4] sm:$0xf]
        %v844 = vld [vmem:[%s12] sm:$0xff]
        %v845 = vld [vmem:[%s12 + $0x8] sm:$0xff]
        %847 = vset.pattern.permute.xlu0 0
        %848 = vperm.xlu0 %847, %v844
        %v849 = vpop.permute.xlu0 %848
        %852 = vset.pattern.permute.xlu0 0
        %853 = vperm.xlu0 %852, %v845
        %v854 = vpop.permute.xlu0 %853
        %v858 = vunpack.c.l.b16 %v842
        %v859 = vunpack.c.l.b16 %v843
        %v860 = vpack.c.b16 %v859, %v858
        %v862 = vsel %vm693, %v860, 0
        %v865 = vsel %vm614, %v725, 0
        %867 = vmatpush.bf16.msra.mxu0 0
        %868 = vmatpush.bf16.msra.mxu0 0
        %869 = vmatpush.bf16.msra.mxu0 0
        %870 = vmatpush.bf16.msra.mxu0 0
        %871 = vmatpush.bf16.msra.mxu0 0
        %872 = vmatpush.bf16.msra.mxu0 0
        %873 = vmatpush.bf16.msra.mxu0 0
        %874 = vmatpush.bf16.msra.mxu0 %v865
        %875 = vmatmul.bf16.gmra.mxu0 %v862
        %v876 = vpop.f32.mrf.mxu0
        %v877 = vadd.f32 %v849, %v876
        %v878 = vpop.f32.mrf.mxu0
        %v879 = vadd.f32 %v854, %v878
        %880 = vdwg.mxu0
        %v881 = vadd.f32 %v840, %v877
        %v882 = vadd.f32 %v841, %v879
        %vm883 = vcmp.gt.f32.partialorder %v881, 0.0
        %vm884 = vcmp.gt.f32.partialorder %v882, 0.0
        %v885 = vstv %s721
        %v886 = vmul.f32 %v885, %v881
        %v887 = vmul.f32 %v885, %v882
        %v888 = vsel %vm883, %v881, %v886
        %v889 = vsel %vm884, %v882, %v887
        %v890 = vmul.f32 %v888, %v602
        %v891 = vmul.f32 %v889, %v602
        %s892 = sld [smem:[#allocation2 + $0x6]]
        %s893 = sld [smem:[#allocation2 + $0x7]]
        %s894 = sld [smem:[#allocation2 + $0x8]]
        %895 = vrot.lane.b32.xlu0 %v890, 4
        %v896 = vpop.permute.xlu0 %895
        %897 = vrot.lane.b32.xlu0 %v891, 4
        %v898 = vpop.permute.xlu0 %897
        %v899 = vpack.c.bf16 %v896, %v896
        %v900 = vpack.c.bf16 %v898, %v898
        %v901 = vpack.c.bf16 %v890, %v890
        %v902 = vpack.c.bf16 %v891, %v891
        %v905 = vunpack.c.l.b16 %v899
        %v906 = vunpack.c.l.b16 %v900
        %v907 = vpack.c.b16 %v906, %v905
        %v911 = vunpack.c.l.b16 %v901
        %v912 = vunpack.c.l.b16 %v902
        %v913 = vpack.c.b16 %v912, %v911
        %v915 = vld [vmem:[%s13] sm:$0xf]
        %v916 = vld [vmem:[%s13 + $0x4] sm:$0xf]
        %v917 = vld [vmem:[%s14] sm:$0xff]
        %v918 = vld [vmem:[%s14 + $0x8] sm:$0xff]
        %920 = vset.pattern.permute.xlu0 0
        %921 = vperm.xlu0 %920, %v917
        %v922 = vpop.permute.xlu0 %921
        %925 = vset.pattern.permute.xlu0 0
        %926 = vperm.xlu0 %925, %v918
        %v927 = vpop.permute.xlu0 %926
        %v931 = vunpack.c.l.b16 %v915
        %v932 = vunpack.c.l.b16 %v916
        %v933 = vpack.c.b16 %v932, %v931
        %v935 = vsel %vm817, %v933, 0
        %937 = vmatpush.bf16.msra.mxu0 0
        %938 = vmatpush.bf16.msra.mxu0 0
        %939 = vmatpush.bf16.msra.mxu0 0
        %940 = vmatpush.bf16.msra.mxu0 0
        %941 = vmatpush.bf16.msra.mxu0 0
        %942 = vmatpush.bf16.msra.mxu0 0
        %943 = vmatpush.bf16.msra.mxu0 %v913
        %944 = vmatpush.bf16.msra.mxu0 %v907
        %945 = vmatmul.bf16.gmra.mxu0 %v935
        %v946 = vpop.f32.mrf.mxu0
        %v947 = vadd.f32 %v922, %v946
        %v948 = vpop.f32.mrf.mxu0
        %v949 = vadd.f32 %v927, %v948
        %950 = vdwg.mxu0
        %vm951 = vcmp.gt.f32.partialorder %v947, 0.0
        %vm952 = vcmp.gt.f32.partialorder %v949, 0.0
        %v953 = vstv %s892
        %v954 = vmul.f32 %v953, %v947
        %v955 = vmul.f32 %v953, %v949
        %v956 = vsel %vm951, %v947, %v954
        %v957 = vsel %vm952, %v949, %v955
        %v958 = vmul.f32 %v956, %v602
        %v959 = vmul.f32 %v957, %v602
        %960 = vrot.lane.b32.xlu0 %v958, 4
        %v961 = vpop.permute.xlu0 %960
        %962 = vrot.lane.b32.xlu0 %v959, 4
        %v963 = vpop.permute.xlu0 %962
        %v964 = vpack.c.bf16 %v961, %v961
        %v965 = vpack.c.bf16 %v963, %v963
        %v966 = vpack.c.bf16 %v958, %v958
        %v967 = vpack.c.bf16 %v959, %v959
        %v970 = vunpack.c.l.b16 %v964
        %v971 = vunpack.c.l.b16 %v965
        %v972 = vpack.c.b16 %v971, %v970
        %v976 = vunpack.c.l.b16 %v966
        %v977 = vunpack.c.l.b16 %v967
        %v978 = vpack.c.b16 %v977, %v976
        %v980 = vld [vmem:[%s15] sm:$0xf]
        %v981 = vld [vmem:[%s15 + $0x4] sm:$0xf]
        %v982 = vld [vmem:[%s16] sm:$0xff]
        %v983 = vld [vmem:[%s16 + $0x8] sm:$0xff]
        %985 = vset.pattern.permute.xlu0 0
        %986 = vperm.xlu0 %985, %v982
        %v987 = vpop.permute.xlu0 %986
        %990 = vset.pattern.permute.xlu0 0
        %991 = vperm.xlu0 %990, %v983
        %v992 = vpop.permute.xlu0 %991
        %v996 = vunpack.c.l.b16 %v980
        %v997 = vunpack.c.l.b16 %v981
        %v998 = vpack.c.b16 %v997, %v996
        %v1000 = vsel %vm817, %v998, 0
        %1002 = vmatpush.bf16.msra.mxu0 0
        %1003 = vmatpush.bf16.msra.mxu0 0
        %1004 = vmatpush.bf16.msra.mxu0 0
        %1005 = vmatpush.bf16.msra.mxu0 0
        %1006 = vmatpush.bf16.msra.mxu0 0
        %1007 = vmatpush.bf16.msra.mxu0 0
        %1008 = vmatpush.bf16.msra.mxu0 %v978
        %1009 = vmatpush.bf16.msra.mxu0 %v972
        %1010 = vmatmul.bf16.gmra.mxu0 %v1000
        %v1011 = vpop.f32.mrf.mxu0
        %v1012 = vadd.f32 %v987, %v1011
        %v1013 = vpop.f32.mrf.mxu0
        %v1014 = vadd.f32 %v992, %v1013
        %1015 = vdwg.mxu0
        %vm1016 = vcmp.gt.f32.partialorder %v1012, 0.0
        %vm1017 = vcmp.gt.f32.partialorder %v1014, 0.0
        %v1018 = vstv %s893
        %v1019 = vmul.f32 %v1018, %v1012
        %v1020 = vmul.f32 %v1018, %v1014
        %v1021 = vsel %vm1016, %v1012, %v1019
        %v1022 = vsel %vm1017, %v1014, %v1020
        %v1023 = vadd.f32 %v1021, %v890
        %v1024 = vadd.f32 %v1022, %v891
        %vm1025 = vcmp.gt.f32.partialorder %v1023, 0.0
        %vm1026 = vcmp.gt.f32.partialorder %v1024, 0.0
        %v1027 = vstv %s894
        %v1028 = vmul.f32 %v1027, %v1023
        %v1029 = vmul.f32 %v1027, %v1024
        %v1030 = vsel %vm1025, %v1023, %v1028
        %v1031 = vsel %vm1026, %v1024, %v1029
        %v1032 = vmul.f32 %v1030, %v602
        %v1033 = vmul.f32 %v1031, %v602
        %1034 = vst [vmem:[%s580] sm:$0xff] %v1032
        %1035 = vst [vmem:[%s580 + $0x8] sm:$0xff] %v1033
        %s1036 = sand.u32 %s424, 1
        %s1037 = scalar_lea.sflag [#allocation3], %s1036
        %s1038 = sand.u32 %s424, 1
        %s1039 = smul.addr %s1038, 16
        %s1040 = scalar_lea.vmem [#allocation5], %s1039
        // Predicated region
        $region97: #{tpu_custom_call.1} parent=91 // pred_check
          %p1041 = pneg %p434
        $region98: #{tpu_custom_call.1} parent=91 // pred_check_branch
          %1043 = sbr.rel (%p1041) target = $region100
        $region99: #{tpu_custom_call.1} parent=91 // pred_region
          %1045 = vsyncadd %s1037, 0
          %s1046 = smul.addr %s33, 8
          %s1047 = scalar_lea.hbm %s18, %s1046
          %s1048 = sshll.u32 %s1040, 4
          %s1049 = int_to_ptr.vmem [resolvable:$true] %s1048
          %s1050 = sshll.u32 %s1047, 4
          %s1051 = int_to_ptr.hbm [resolvable:$true] %s1050
          %1056 = dma.vmem_to_hbm [thread:$0]  %s1049, 256, %s1051, %s1037, 128, 256, 8
        $region100: #{tpu_custom_call.1} parent=91 // pred_fallthru
          _
      $region92: #{tpu_custom_call.1} parent=5 // pred_fallthru
        _
      %p1057 = scmp.le.s32.totalorder 2, %s28
      // Predicated region
      $region101: #{tpu_custom_call.1} parent=5 // pred_check
        %p1058 = pneg %p1057
      $region102: #{tpu_custom_call.1} parent=5 // pred_check_branch
        %1060 = sbr.rel (%p1058) target = $region104
      $region103: #{tpu_custom_call.1} parent=5 // pred_region
        %s1061 = ssub.s32 %s28, 2
        // Predicated region
        $region105: #{tpu_custom_call.1} parent=103 // pred_check
          %p1062 = pneg %p440
        $region106: #{tpu_custom_call.1} parent=103 // pred_check_branch
          %1064 = sbr.rel (%p1062) target = $region108
        $region107: #{tpu_custom_call.1} parent=103 // pred_region
          %s1065 = sand.u32 %s425, 1
          %s1066 = scalar_lea.sflag [#allocation3], %s1065
          %s1067 = sand.u32 %s425, 1
          %s1068 = smul.addr %s1067, 16
          %s1069 = scalar_lea.vmem [#allocation5], %s1068
          %1071 = dma.done %s1066, 256
        $region108: #{tpu_custom_call.1} parent=103 // pred_fallthru
          _
      $region104: #{tpu_custom_call.1} parent=5 // pred_fallthru
        _
    $region6: #{tpu_custom_call.1} parent=1 // loop_footer
      %s32 = sadd.s32 1, %s28
    $region7: #{tpu_custom_call.1} parent=1 // loop_footer_branch
      %27 = sbr.rel target = $region3
    $region8: #{tpu_custom_call.1} parent=1 // loop_exit
      _
    %1072 = vsyncpa [#allocation3], 1
    %s1073 = scalar_lea.sflag [#allocation3], 1
    %1074 = vsyncpa %s1073, 1
    %1075 = vsyncpa [#allocation4], 1
    %s1076 = scalar_lea.sflag [#allocation4], 1
    %1077 = vsyncpa %s1076, 1

// kernel: tpu_custom_call.1
$region0: #{tpu_custom_call.1}
  #allocation0 [shape = 'u32[]', space=smem, size = 0x4, offset = 0x4, fixed_abs, tag = 'smem constant byte address 0x4 - core index']
  #allocation1 [shape = 'u32[72,128]{1,0:T(1,128)}', space=vmem, size = 0x9000, scoped, tag = 'internal scratch']
  %s0 = inlined_call_operand.vmem [shape: f32[8,256], index: 0, kind: input, shape index: {}]
  %s1 = inlined_call_operand.vmem [shape: bf16[8,16], index: 1, kind: input, shape index: {}]
  %s2 = inlined_call_operand.vmem [shape: f32[8,1], index: 2, kind: input, shape index: {}]
  %s3 = inlined_call_operand.vmem [shape: bf16[8,16], index: 3, kind: input, shape index: {}]
  %s4 = inlined_call_operand.vmem [shape: f32[8,1], index: 4, kind: input, shape index: {}]
  %s5 = inlined_call_operand.vmem [shape: bf16[8,8], index: 5, kind: input, shape index: {}]
  %s6 = inlined_call_operand.vmem [shape: f32[8,1], index: 6, kind: input, shape index: {}]
  %s7 = inlined_call_operand.vmem [shape: bf16[16,16], index: 7, kind: input, shape index: {}]
  %s8 = inlined_call_operand.vmem [shape: f32[16,1], index: 8, kind: input, shape index: {}]
  %s9 = inlined_call_operand.vmem [shape: bf16[16,32], index: 9, kind: input, shape index: {}]
  %s10 = inlined_call_operand.vmem [shape: f32[16,1], index: 10, kind: input, shape index: {}]
  %s11 = inlined_call_operand.vmem [shape: bf16[16,8], index: 11, kind: input, shape index: {}]
  %s12 = inlined_call_operand.vmem [shape: f32[16,1], index: 12, kind: input, shape index: {}]
  %s13 = inlined_call_operand.vmem [shape: bf16[16,32], index: 13, kind: input, shape index: {}]
  %s14 = inlined_call_operand.vmem [shape: f32[16,1], index: 14, kind: input, shape index: {}]
  %s15 = inlined_call_operand.vmem [shape: bf16[16,32], index: 15, kind: input, shape index: {}]
  %s16 = inlined_call_operand.vmem [shape: f32[16,1], index: 16, kind: input, shape index: {}]
  %s17 = inlined_call_operand.vmem [shape: f32[9], index: 17, kind: input, shape index: {}]
  %s18 = inlined_call_operand.hbm [shape: f32[16,256], index: 18, kind: output, shape index: {}]
  %s19 = sld [smem:[#allocation0]]
  $region109: #{tpu_custom_call.1} parent=0
    _
  %s21 = ssub.s32 1, %s19
  %s22 = scalar_select 0, %s21, %s19
  $region1: #{tpu_custom_call.1} parent=0
    #allocation2 [shape = 'u8[512]{0}', space=smem, size = 0x200, scoped, tag = 'input window, operand 17, single buffered']
    #allocation3 [shape = 's32[2]{0}', space=sflag, size = 0x8, scoped, tag = 'scoped memory for tpu_custom_call.1']
    #allocation4 [shape = 's32[2]{0}', space=sflag, size = 0x8, scoped, tag = 'scoped memory for tpu_custom_call.1']
    #allocation5 [shape = 'u8[16384]{0}', space=vmem, size = 0x4000, scoped, tag = 'output window, operand 0']
    %23 = vsyncpa [#allocation4], 0
    %24 = vsyncpa [#allocation3], 0
    %s25 = scalar_lea.sflag [#allocation3], 1
    %26 = vsyncpa %s25, 0
    loop: start=0, step=1, limit=4
    $region2: #{tpu_custom_call.1} parent=1 // loop_pre_header
      _
    $region3: #{tpu_custom_call.1} parent=1 // loop_header
      %s28 = sphi 0, %s32
      %p29 = scmp.ge.s32.totalorder %s28, 4
      %s38 = sphi 0, %s40
      %s41 = sphi 0, %s38
      %s42 = sphi 0, %s41
      %s58 = sphi 0, %s42
      %s62 = sphi 0, %s62
      %s64 = sphi 0, %s62
      %s65 = sphi 0, %s64
      %s79 = sphi 0, %s65
      %s83 = sphi 0, %s83
      %s85 = sphi 0, %s83
      %s86 = sphi 0, %s85
      %s100 = sphi 0, %s86
      %s104 = sphi 0, %s104
      %s106 = sphi 0, %s104
      %s107 = sphi 0, %s106
      %s121 = sphi 0, %s107
      %s125 = sphi 0, %s125
      %s127 = sphi 0, %s125
      %s128 = sphi 0, %s127
      %s142 = sphi 0, %s128
      %s146 = sphi 0, %s146
      %s148 = sphi 0, %s146
      %s149 = sphi 0, %s148
      %s163 = sphi 0, %s149
      %s167 = sphi 0, %s167
      %s169 = sphi 0, %s167
      %s170 = sphi 0, %s169
      %s184 = sphi 0, %s170
      %s188 = sphi 0, %s188
      %s190 = sphi 0, %s188
      %s191 = sphi 0, %s190
      %s205 = sphi 0, %s191
      %s209 = sphi 0, %s209
      %s211 = sphi 0, %s209
      %s212 = sphi 0, %s211
      %s226 = sphi 0, %s212
      %s230 = sphi 0, %s230
      %s232 = sphi 0, %s230
      %s233 = sphi 0, %s232
      %s247 = sphi 0, %s233
      %s251 = sphi 0, %s251
      %s253 = sphi 0, %s251
      %s254 = sphi 0, %s253
      %s268 = sphi 0, %s254
      %s272 = sphi 0, %s272
      %s274 = sphi 0, %s272
      %s275 = sphi 0, %s274
      %s289 = sphi 0, %s275
      %s293 = sphi 0, %s293
      %s295 = sphi 0, %s293
      %s296 = sphi 0, %s295
      %s310 = sphi 0, %s296
      %s314 = sphi 0, %s314
      %s316 = sphi 0, %s314
      %s317 = sphi 0, %s316
      %s331 = sphi 0, %s317
      %s335 = sphi 0, %s335
      %s337 = sphi 0, %s335
      %s338 = sphi 0, %s337
      %s352 = sphi 0, %s338
      %s356 = sphi 0, %s356
      %s358 = sphi 0, %s356
      %s359 = sphi 0, %s358
      %s373 = sphi 0, %s359
      %s377 = sphi 0, %s377
      %s379 = sphi 0, %s377
      %s380 = sphi 0, %s379
      %s394 = sphi 0, %s380
      %s398 = sphi 0, %s398
      %s400 = sphi 0, %s398
      %s401 = sphi 0, %s400
      %s415 = sphi 0, %s401
      %s421 = sphi 0, %s423
      %s424 = sphi 0, %s421
      %s425 = sphi 0, %s424
      %s441 = sphi 0, %s425
    $region4: #{tpu_custom_call.1} parent=1 // loop_header_branch
      %31 = sbr.rel (%p29) target = $region8
    $region5: #{tpu_custom_call.1} parent=1 // loop_body
      %s33 = ssub.s32 %s28, 1
      %s34 = ssub.s32 %s28, 2
      %s35 = sadd.s32 %s28, 1
      %s36 = ssub.s32 %s28, %s35
      %p37 = scmp.eq.s32.totalorder %s36, 0
      %s39 = sadd.s32 %s38, 1
      %s40 = scalar_select %p37, %s38, %s39
      %p43 = pneg %p37
      %p44 = scmp.eq.s32.totalorder %s28, 1
      %p45 = por %p43, %p44
      %p46 = scmp.ne.s32.totalorder %s38, %s41
      %p47 = scmp.eq.s32.totalorder %s28, 0
      %p48 = por %p46, %p47
      %p49 = scmp.ne.s32.totalorder %s38, %s41
      %p50 = scmp.eq.s32.totalorder %s33, 1
      %p51 = por %p49, %p50
      %p52 = scmp.ne.s32.totalorder %s41, %s42
      %p53 = scmp.eq.s32.totalorder %s33, 0
      %p54 = por %p52, %p53
      %p55 = scmp.ne.s32.totalorder %s41, %s42
      %p56 = scmp.eq.s32.totalorder %s34, 1
      %p57 = por %p55, %p56
      %p59 = scmp.ne.s32.totalorder %s42, %s58
      %p60 = scmp.eq.s32.totalorder %s34, 0
      %p61 = por %p59, %p60
      %s63 = sadd.s32 %s62, 1
      %p66 = scmp.eq.s32.totalorder %s28, 1
      %p67 = scmp.ne.s32.totalorder %s62, %s64
      %p68 = scmp.eq.s32.totalorder %s28, 0
      %p69 = por %p67, %p68
      %p70 = scmp.ne.s32.totalorder %s62, %s64
      %p71 = scmp.eq.s32.totalorder %s33, 1
      %p72 = por %p70, %p71
      %p73 = scmp.ne.s32.totalorder %s64, %s65
      %p74 = scmp.eq.s32.totalorder %s33, 0
      %p75 = por %p73, %p74
      %p76 = scmp.ne.s32.totalorder %s64, %s65
      %p77 = scmp.eq.s32.totalorder %s34, 1
      %p78 = por %p76, %p77
      %p80 = scmp.ne.s32.totalorder %s65, %s79
      %p81 = scmp.eq.s32.totalorder %s34, 0
      %p82 = por %p80, %p81
      %s84 = sadd.s32 %s83, 1
      %p87 = scmp.eq.s32.totalorder %s28, 1
      %p88 = scmp.ne.s32.totalorder %s83, %s85
      %p89 = scmp.eq.s32.totalorder %s28, 0
      %p90 = por %p88, %p89
      %p91 = scmp.ne.s32.totalorder %s83, %s85
      %p92 = scmp.eq.s32.totalorder %s33, 1
      %p93 = por %p91, %p92
      %p94 = scmp.ne.s32.totalorder %s85, %s86
      %p95 = scmp.eq.s32.totalorder %s33, 0
      %p96 = por %p94, %p95
      %p97 = scmp.ne.s32.totalorder %s85, %s86
      %p98 = scmp.eq.s32.totalorder %s34, 1
      %p99 = por %p97, %p98
      %p101 = scmp.ne.s32.totalorder %s86, %s100
      %p102 = scmp.eq.s32.totalorder %s34, 0
      %p103 = por %p101, %p102
      %s105 = sadd.s32 %s104, 1
      %p108 = scmp.eq.s32.totalorder %s28, 1
      %p109 = scmp.ne.s32.totalorder %s104, %s106
      %p110 = scmp.eq.s32.totalorder %s28, 0
      %p111 = por %p109, %p110
      %p112 = scmp.ne.s32.totalorder %s104, %s106
      %p113 = scmp.eq.s32.totalorder %s33, 1
      %p114 = por %p112, %p113
      %p115 = scmp.ne.s32.totalorder %s106, %s107
      %p116 = scmp.eq.s32.totalorder %s33, 0
      %p117 = por %p115, %p116
      %p118 = scmp.ne.s32.totalorder %s106, %s107
      %p119 = scmp.eq.s32.totalorder %s34, 1
      %p120 = por %p118, %p119
      %p122 = scmp.ne.s32.totalorder %s107, %s121
      %p123 = scmp.eq.s32.totalorder %s34, 0
      %p124 = por %p122, %p123
      %s126 = sadd.s32 %s125, 1
      %p129 = scmp.eq.s32.totalorder %s28, 1
      %p130 = scmp.ne.s32.totalorder %s125, %s127
      %p131 = scmp.eq.s32.totalorder %s28, 0
      %p132 = por %p130, %p131
      %p133 = scmp.ne.s32.totalorder %s125, %s127
      %p134 = scmp.eq.s32.totalorder %s33, 1
      %p135 = por %p133, %p134
      %p136 = scmp.ne.s32.totalorder %s127, %s128
      %p137 = scmp.eq.s32.totalorder %s33, 0
      %p138 = por %p136, %p137
      %p139 = scmp.ne.s32.totalorder %s127, %s128
      %p140 = scmp.eq.s32.totalorder %s34, 1
      %p141 = por %p139, %p140
      %p143 = scmp.ne.s32.totalorder %s128, %s142
      %p144 = scmp.eq.s32.totalorder %s34, 0
      %p145 = por %p143, %p144
      %s147 = sadd.s32 %s146, 1
      %p150 = scmp.eq.s32.totalorder %s28, 1
      %p151 = scmp.ne.s32.totalorder %s146, %s148
      %p152 = scmp.eq.s32.totalorder %s28, 0
      %p153 = por %p151, %p152
      %p154 = scmp.ne.s32.totalorder %s146, %s148
      %p155 = scmp.eq.s32.totalorder %s33, 1
      %p156 = por %p154, %p155
      %p157 = scmp.ne.s32.totalorder %s148, %s149
      %p158 = scmp.eq.s32.totalorder %s33, 0
      %p159 = por %p157, %p158
      %p160 = scmp.ne.s32.totalorder %s148, %s149
      %p161 = scmp.eq.s32.totalorder %s34, 1
      %p162 = por %p160, %p161
      %p164 = scmp.ne.s32.totalorder %s149, %s163
      %p165 = scmp.eq.s32.totalorder %s34, 0
      %p166 = por %p164, %p165
      %s168 = sadd.s32 %s167, 1
      %p171 = scmp.eq.s32.totalorder %s28, 1
      %p172 = scmp.ne.s32.totalorder %s167, %s169
      %p173 = scmp.eq.s32.totalorder %s28, 0
      %p174 = por %p172, %p173
      %p175 = scmp.ne.s32.totalorder %s167, %s169
      %p176 = scmp.eq.s32.totalorder %s33, 1
      %p177 = por %p175, %p176
      %p178 = scmp.ne.s32.totalorder %s169, %s170
      %p179 = scmp.eq.s32.totalorder %s33, 0
      %p180 = por %p178, %p179
      %p181 = scmp.ne.s32.totalorder %s169, %s170
      %p182 = scmp.eq.s32.totalorder %s34, 1
      %p183 = por %p181, %p182
      %p185 = scmp.ne.s32.totalorder %s170, %s184
      %p186 = scmp.eq.s32.totalorder %s34, 0
      %p187 = por %p185, %p186
      %s189 = sadd.s32 %s188, 1
      %p192 = scmp.eq.s32.totalorder %s28, 1
      %p193 = scmp.ne.s32.totalorder %s188, %s190
      %p194 = scmp.eq.s32.totalorder %s28, 0
      %p195 = por %p193, %p194
      %p196 = scmp.ne.s32.totalorder %s188, %s190
      %p197 = scmp.eq.s32.totalorder %s33, 1
      %p198 = por %p196, %p197
      %p199 = scmp.ne.s32.totalorder %s190, %s191
      %p200 = scmp.eq.s32.totalorder %s33, 0
      %p201 = por %p199, %p200
      %p202 = scmp.ne.s32.totalorder %s190, %s191
      %p203 = scmp.eq.s32.totalorder %s34, 1
      %p204 = por %p202, %p203
      %p206 = scmp.ne.s32.totalorder %s191, %s205
      %p207 = scmp.eq.s32.totalorder %s34, 0
      %p208 = por %p206, %p207
      %s210 = sadd.s32 %s209, 1
      %p213 = scmp.eq.s32.totalorder %s28, 1
      %p214 = scmp.ne.s32.totalorder %s209, %s211
      %p215 = scmp.eq.s32.totalorder %s28, 0
      %p216 = por %p214, %p215
      %p217 = scmp.ne.s32.totalorder %s209, %s211
      %p218 = scmp.eq.s32.totalorder %s33, 1
      %p219 = por %p217, %p218
      %p220 = scmp.ne.s32.totalorder %s211, %s212
      %p221 = scmp.eq.s32.totalorder %s33, 0
      %p222 = por %p220, %p221
      %p223 = scmp.ne.s32.totalorder %s211, %s212
      %p224 = scmp.eq.s32.totalorder %s34, 1
      %p225 = por %p223, %p224
      %p227 = scmp.ne.s32.totalorder %s212, %s226
      %p228 = scmp.eq.s32.totalorder %s34, 0
      %p229 = por %p227, %p228
      %s231 = sadd.s32 %s230, 1
      %p234 = scmp.eq.s32.totalorder %s28, 1
      %p235 = scmp.ne.s32.totalorder %s230, %s232
      %p236 = scmp.eq.s32.totalorder %s28, 0
      %p237 = por %p235, %p236
      %p238 = scmp.ne.s32.totalorder %s230, %s232
      %p239 = scmp.eq.s32.totalorder %s33, 1
      %p240 = por %p238, %p239
      %p241 = scmp.ne.s32.totalorder %s232, %s233
      %p242 = scmp.eq.s32.totalorder %s33, 0
      %p243 = por %p241, %p242
      %p244 = scmp.ne.s32.totalorder %s232, %s233
      %p245 = scmp.eq.s32.totalorder %s34, 1
      %p246 = por %p244, %p245
      %p248 = scmp.ne.s32.totalorder %s233, %s247
      %p249 = scmp.eq.s32.totalorder %s34, 0
      %p250 = por %p248, %p249
      %s252 = sadd.s32 %s251, 1
      %p255 = scmp.eq.s32.totalorder %s28, 1
      %p256 = scmp.ne.s32.totalorder %s251, %s253
      %p257 = scmp.eq.s32.totalorder %s28, 0
      %p258 = por %p256, %p257
      %p259 = scmp.ne.s32.totalorder %s251, %s253
      %p260 = scmp.eq.s32.totalorder %s33, 1
      %p261 = por %p259, %p260
      %p262 = scmp.ne.s32.totalorder %s253, %s254
      %p263 = scmp.eq.s32.totalorder %s33, 0
      %p264 = por %p262, %p263
      %p265 = scmp.ne.s32.totalorder %s253, %s254
      %p266 = scmp.eq.s32.totalorder %s34, 1
      %p267 = por %p265, %p266
      %p269 = scmp.ne.s32.totalorder %s254, %s268
      %p270 = scmp.eq.s32.totalorder %s34, 0
      %p271 = por %p269, %p270
      %s273 = sadd.s32 %s272, 1
      %p276 = scmp.eq.s32.totalorder %s28, 1
      %p277 = scmp.ne.s32.totalorder %s272, %s274
      %p278 = scmp.eq.s32.totalorder %s28, 0
      %p279 = por %p277, %p278
      %p280 = scmp.ne.s32.totalorder %s272, %s274
      %p281 = scmp.eq.s32.totalorder %s33, 1
      %p282 = por %p280, %p281
      %p283 = scmp.ne.s32.totalorder %s274, %s275
      %p284 = scmp.eq.s32.totalorder %s33, 0
      %p285 = por %p283, %p284
      %p286 = scmp.ne.s32.totalorder %s274, %s275
      %p287 = scmp.eq.s32.totalorder %s34, 1
      %p288 = por %p286, %p287
      %p290 = scmp.ne.s32.totalorder %s275, %s289
      %p291 = scmp.eq.s32.totalorder %s34, 0
      %p292 = por %p290, %p291
      %s294 = sadd.s32 %s293, 1
      %p297 = scmp.eq.s32.totalorder %s28, 1
      %p298 = scmp.ne.s32.totalorder %s293, %s295
      %p299 = scmp.eq.s32.totalorder %s28, 0
      %p300 = por %p298, %p299
      %p301 = scmp.ne.s32.totalorder %s293, %s295
      %p302 = scmp.eq.s32.totalorder %s33, 1
      %p303 = por %p301, %p302
      %p304 = scmp.ne.s32.totalorder %s295, %s296
      %p305 = scmp.eq.s32.totalorder %s33, 0
      %p306 = por %p304, %p305
      %p307 = scmp.ne.s32.totalorder %s295, %s296
      %p308 = scmp.eq.s32.totalorder %s34, 1
      %p309 = por %p307, %p308
      %p311 = scmp.ne.s32.totalorder %s296, %s310
      %p312 = scmp.eq.s32.totalorder %s34, 0
      %p313 = por %p311, %p312
      %s315 = sadd.s32 %s314, 1
      %p318 = scmp.eq.s32.totalorder %s28, 1
      %p319 = scmp.ne.s32.totalorder %s314, %s316
      %p320 = scmp.eq.s32.totalorder %s28, 0
      %p321 = por %p319, %p320
      %p322 = scmp.ne.s32.totalorder %s314, %s316
      %p323 = scmp.eq.s32.totalorder %s33, 1
      %p324 = por %p322, %p323
      %p325 = scmp.ne.s32.totalorder %s316, %s317
      %p326 = scmp.eq.s32.totalorder %s33, 0
      %p327 = por %p325, %p326
      %p328 = scmp.ne.s32.totalorder %s316, %s317
      %p329 = scmp.eq.s32.totalorder %s34, 1
      %p330 = por %p328, %p329
      %p332 = scmp.ne.s32.totalorder %s317, %s331
      %p333 = scmp.eq.s32.totalorder %s34, 0
      %p334 = por %p332, %p333
      %s336 = sadd.s32 %s335, 1
      %p339 = scmp.eq.s32.totalorder %s28, 1
      %p340 = scmp.ne.s32.totalorder %s335, %s337
      %p341 = scmp.eq.s32.totalorder %s28, 0
      %p342 = por %p340, %p341
      %p343 = scmp.ne.s32.totalorder %s335, %s337
      %p344 = scmp.eq.s32.totalorder %s33, 1
      %p345 = por %p343, %p344
      %p346 = scmp.ne.s32.totalorder %s337, %s338
      %p347 = scmp.eq.s32.totalorder %s33, 0
      %p348 = por %p346, %p347
      %p349 = scmp.ne.s32.totalorder %s337, %s338
      %p350 = scmp.eq.s32.totalorder %s34, 1
      %p351 = por %p349, %p350
      %p353 = scmp.ne.s32.totalorder %s338, %s352
      %p354 = scmp.eq.s32.totalorder %s34, 0
      %p355 = por %p353, %p354
      %s357 = sadd.s32 %s356, 1
      %p360 = scmp.eq.s32.totalorder %s28, 1
      %p361 = scmp.ne.s32.totalorder %s356, %s358
      %p362 = scmp.eq.s32.totalorder %s28, 0
      %p363 = por %p361, %p362
      %p364 = scmp.ne.s32.totalorder %s356, %s358
      %p365 = scmp.eq.s32.totalorder %s33, 1
      %p366 = por %p364, %p365
      %p367 = scmp.ne.s32.totalorder %s358, %s359
      %p368 = scmp.eq.s32.totalorder %s33, 0
      %p369 = por %p367, %p368
      %p370 = scmp.ne.s32.totalorder %s358, %s359
      %p371 = scmp.eq.s32.totalorder %s34, 1
      %p372 = por %p370, %p371
      %p374 = scmp.ne.s32.totalorder %s359, %s373
      %p375 = scmp.eq.s32.totalorder %s34, 0
      %p376 = por %p374, %p375
      %s378 = sadd.s32 %s377, 1
      %p381 = scmp.eq.s32.totalorder %s28, 1
      %p382 = scmp.ne.s32.totalorder %s377, %s379
      %p383 = scmp.eq.s32.totalorder %s28, 0
      %p384 = por %p382, %p383
      %p385 = scmp.ne.s32.totalorder %s377, %s379
      %p386 = scmp.eq.s32.totalorder %s33, 1
      %p387 = por %p385, %p386
      %p388 = scmp.ne.s32.totalorder %s379, %s380
      %p389 = scmp.eq.s32.totalorder %s33, 0
      %p390 = por %p388, %p389
      %p391 = scmp.ne.s32.totalorder %s379, %s380
      %p392 = scmp.eq.s32.totalorder %s34, 1
      %p393 = por %p391, %p392
      %p395 = scmp.ne.s32.totalorder %s380, %s394
      %p396 = scmp.eq.s32.totalorder %s34, 0
      %p397 = por %p395, %p396
      %s399 = sadd.s32 %s398, 1
      %p402 = scmp.eq.s32.totalorder %s28, 1
      %p403 = scmp.ne.s32.totalorder %s398, %s400
      %p404 = scmp.eq.s32.totalorder %s28, 0
      %p405 = por %p403, %p404
      %p406 = scmp.ne.s32.totalorder %s398, %s400
      %p407 = scmp.eq.s32.totalorder %s33, 1
      %p408 = por %p406, %p407
      %p409 = scmp.ne.s32.totalorder %s400, %s401
      %p410 = scmp.eq.s32.totalorder %s33, 0
      %p411 = por %p409, %p410
      %p412 = scmp.ne.s32.totalorder %s400, %s401
      %p413 = scmp.eq.s32.totalorder %s34, 1
      %p414 = por %p412, %p413
      %p416 = scmp.ne.s32.totalorder %s401, %s415
      %p417 = scmp.eq.s32.totalorder %s34, 0
      %p418 = por %p416, %p417
      %s419 = ssub.s32 %s28, %s35
      %p420 = scmp.eq.s32.totalorder %s419, 0
      %s422 = sadd.s32 %s421, 1
      %s423 = scalar_select %p420, %s421, %s422
      %p426 = pneg %p420
      %p427 = scmp.eq.s32.totalorder %s28, 1
      %p428 = por %p426, %p427
      %p429 = scmp.ne.s32.totalorder %s421, %s424
      %p430 = scmp.eq.s32.totalorder %s28, 0
      %p431 = por %p429, %p430
      %p432 = scmp.ne.s32.totalorder %s421, %s424
      %p433 = scmp.eq.s32.totalorder %s33, 1
      %p434 = por %p432, %p433
      %p435 = scmp.ne.s32.totalorder %s424, %s425
      %p436 = scmp.eq.s32.totalorder %s33, 0
      %p437 = por %p435, %p436
      %p438 = scmp.ne.s32.totalorder %s424, %s425
      %p439 = scmp.eq.s32.totalorder %s34, 1
      %p440 = por %p438, %p439
      %p442 = scmp.ne.s32.totalorder %s425, %s441
      %p443 = scmp.eq.s32.totalorder %s34, 0
      %p444 = por %p442, %p443
      %p445 = scmp.le.s32.totalorder 1, %s28
      %p446 = scmp.lt.s32.totalorder %s28, 3
      %p447 = pnand %p445, %p446
      %p448 = pneg %p447
      // Predicated region
      $region9: #{tpu_custom_call.1} parent=5 // pred_check
        _
      $region10: #{tpu_custom_call.1} parent=5 // pred_check_branch
        %450 = sbr.rel (%p447) target = $region12
      $region11: #{tpu_custom_call.1} parent=5 // pred_region
        %s451 = ssub.s32 %s28, 1
        // Predicated region
        $region13: #{tpu_custom_call.1} parent=11 // pred_check
          %p452 = pneg %p75
        $region14: #{tpu_custom_call.1} parent=11 // pred_check_branch
          %454 = sbr.rel (%p452) target = $region16
        $region15: #{tpu_custom_call.1} parent=11 // pred_region
          _
        $region16: #{tpu_custom_call.1} parent=11 // pred_fallthru
          _
        // Predicated region
        $region17: #{tpu_custom_call.1} parent=11 // pred_check
          %p455 = pneg %p96
        $region18: #{tpu_custom_call.1} parent=11 // pred_check_branch
          %457 = sbr.rel (%p455) target = $region20
        $region19: #{tpu_custom_call.1} parent=11 // pred_region
          _
        $region20: #{tpu_custom_call.1} parent=11 // pred_fallthru
          _
        // Predicated region
        $region21: #{tpu_custom_call.1} parent=11 // pred_check
          %p458 = pneg %p117
        $region22: #{tpu_custom_call.1} parent=11 // pred_check_branch
          %460 = sbr.rel (%p458) target = $region24
        $region23: #{tpu_custom_call.1} parent=11 // pred_region
          _
        $region24: #{tpu_custom_call.1} parent=11 // pred_fallthru
          _
        // Predicated region
        $region25: #{tpu_custom_call.1} parent=11 // pred_check
          %p461 = pneg %p138
        $region26: #{tpu_custom_call.1} parent=11 // pred_check_branch
          %463 = sbr.rel (%p461) target = $region28
        $region27: #{tpu_custom_call.1} parent=11 // pred_region
          _
        $region28: #{tpu_custom_call.1} parent=11 // pred_fallthru
          _
        // Predicated region
        $region29: #{tpu_custom_call.1} parent=11 // pred_check
          %p464 = pneg %p159
        $region30: #{tpu_custom_call.1} parent=11 // pred_check_branch
          %466 = sbr.rel (%p464) target = $region32
        $region31: #{tpu_custom_call.1} parent=11 // pred_region
          _
        $region32: #{tpu_custom_call.1} parent=11 // pred_fallthru
          _
        // Predicated region
        $region33: #{tpu_custom_call.1} parent=11 // pred_check
          %p467 = pneg %p180
        $region34: #{tpu_custom_call.1} parent=11 // pred_check_branch
          %469 = sbr.rel (%p467) target = $region36
        $region35: #{tpu_custom_call.1} parent=11 // pred_region
          _
        $region36: #{tpu_custom_call.1} parent=11 // pred_fallthru
          _
        // Predicated region
        $region37: #{tpu_custom_call.1} parent=11 // pred_check
          %p470 = pneg %p201
        $region38: #{tpu_custom_call.1} parent=11 // pred_check_branch
          %472 = sbr.rel (%p470) target = $region40
        $region39: #{tpu_custom_call.1} parent=11 // pred_region
          _
        $region40: #{tpu_custom_call.1} parent=11 // pred_fallthru
          _
        // Predicated region
        $region41: #{tpu_custom_call.1} parent=11 // pred_check
          %p473 = pneg %p222
        $region42: #{tpu_custom_call.1} parent=11 // pred_check_branch
          %475 = sbr.rel (%p473) target = $region44
        $region43: #{tpu_custom_call.1} parent=11 // pred_region
          _
        $region44: #{tpu_custom_call.1} parent=11 // pred_fallthru
          _
        // Predicated region
        $region45: #{tpu_custom_call.1} parent=11 // pred_check
          %p476 = pneg %p243
        $region46: #{tpu_custom_call.1} parent=11 // pred_check_branch
          %478 = sbr.rel (%p476) target = $region48
        $region47: #{tpu_custom_call.1} parent=11 // pred_region
          _
        $region48: #{tpu_custom_call.1} parent=11 // pred_fallthru
          _
        // Predicated region
        $region49: #{tpu_custom_call.1} parent=11 // pred_check
          %p479 = pneg %p264
        $region50: #{tpu_custom_call.1} parent=11 // pred_check_branch
          %481 = sbr.rel (%p479) target = $region52
        $region51: #{tpu_custom_call.1} parent=11 // pred_region
          _
        $region52: #{tpu_custom_call.1} parent=11 // pred_fallthru
          _
        // Predicated region
        $region53: #{tpu_custom_call.1} parent=11 // pred_check
          %p482 = pneg %p285
        $region54: #{tpu_custom_call.1} parent=11 // pred_check_branch
          %484 = sbr.rel (%p482) target = $region56
        $region55: #{tpu_custom_call.1} parent=11 // pred_region
          _
        $region56: #{tpu_custom_call.1} parent=11 // pred_fallthru
          _
        // Predicated region
        $region57: #{tpu_custom_call.1} parent=11 // pred_check
          %p485 = pneg %p306
        $region58: #{tpu_custom_call.1} parent=11 // pred_check_branch
          %487 = sbr.rel (%p485) target = $region60
        $region59: #{tpu_custom_call.1} parent=11 // pred_region
          _
        $region60: #{tpu_custom_call.1} parent=11 // pred_fallthru
          _
        // Predicated region
        $region61: #{tpu_custom_call.1} parent=11 // pred_check
          %p488 = pneg %p327
        $region62: #{tpu_custom_call.1} parent=11 // pred_check_branch
          %490 = sbr.rel (%p488) target = $region64
        $region63: #{tpu_custom_call.1} parent=11 // pred_region
          _
        $region64: #{tpu_custom_call.1} parent=11 // pred_fallthru
          _
        // Predicated region
        $region65: #{tpu_custom_call.1} parent=11 // pred_check
          %p491 = pneg %p348
        $region66: #{tpu_custom_call.1} parent=11 // pred_check_branch
          %493 = sbr.rel (%p491) target = $region68
        $region67: #{tpu_custom_call.1} parent=11 // pred_region
          _
        $region68: #{tpu_custom_call.1} parent=11 // pred_fallthru
          _
        // Predicated region
        $region69: #{tpu_custom_call.1} parent=11 // pred_check
          %p494 = pneg %p369
        $region70: #{tpu_custom_call.1} parent=11 // pred_check_branch
          %496 = sbr.rel (%p494) target = $region72
        $region71: #{tpu_custom_call.1} parent=11 // pred_region
          _
        $region72: #{tpu_custom_call.1} parent=11 // pred_fallthru
          _
        // Predicated region
        $region73: #{tpu_custom_call.1} parent=11 // pred_check
          %p497 = pneg %p390
        $region74: #{tpu_custom_call.1} parent=11 // pred_check_branch
          %499 = sbr.rel (%p497) target = $region76
        $region75: #{tpu_custom_call.1} parent=11 // pred_region
          _
        $region76: #{tpu_custom_call.1} parent=11 // pred_fallthru
          _
        // Predicated region
        $region77: #{tpu_custom_call.1} parent=11 // pred_check
          %p500 = pneg %p411
        $region78: #{tpu_custom_call.1} parent=11 // pred_check_branch
          %502 = sbr.rel (%p500) target = $region80
        $region79: #{tpu_custom_call.1} parent=11 // pred_region
          %504 = vsyncadd [#allocation4], 0
          %s506 = sshll.u32 %s17, 4
          %s507 = int_to_ptr.vmem [resolvable:$true] %s506
          %509 = dma.vmem_to_smem %s507, 16, [#allocation2], [#allocation4]
        $region80: #{tpu_custom_call.1} parent=11 // pred_fallthru
          _
      $region12: #{tpu_custom_call.1} parent=5 // pred_fallthru
        _
      %p510 = scmp.lt.s32.totalorder %s28, 2
      // Predicated region
      $region81: #{tpu_custom_call.1} parent=5 // pred_check
        %p511 = pneg %p510
      $region82: #{tpu_custom_call.1} parent=5 // pred_check_branch
        %513 = sbr.rel (%p511) target = $region84
      $region83: #{tpu_custom_call.1} parent=5 // pred_region
        // Predicated region
        $region85: #{tpu_custom_call.1} parent=83 // pred_check
          %p514 = pneg %p48
        $region86: #{tpu_custom_call.1} parent=83 // pred_check_branch
          %516 = sbr.rel (%p514) target = $region88
        $region87: #{tpu_custom_call.1} parent=83 // pred_region
          %p517 = scmp.lt.s32.totalorder %s28, 1
          %s518 = scalar_select %p517, %s28, 1
          %s519 = smul.addr %s518, 8
          %s520 = scalar_lea.vmem %s0, %s519
        $region88: #{tpu_custom_call.1} parent=83 // pred_fallthru
          _
      $region84: #{tpu_custom_call.1} parent=5 // pred_fallthru
        _
      %p521 = scmp.le.s32.totalorder 1, %s28
      %p522 = scmp.lt.s32.totalorder %s28, 3
      %p523 = pnand %p521, %p522
      %p524 = pneg %p523
      // Predicated region
      $region89: #{tpu_custom_call.1} parent=5 // pred_check
        _
      $region90: #{tpu_custom_call.1} parent=5 // pred_check_branch
        %526 = sbr.rel (%p523) target = $region92
      $region91: #{tpu_custom_call.1} parent=5 // pred_region
        %s527 = ssub.s32 %s28, 1
        // Predicated region
        $region93: #{tpu_custom_call.1} parent=91 // pred_check
          %p528 = pneg %p411
        $region94: #{tpu_custom_call.1} parent=91 // pred_check_branch
          %530 = sbr.rel (%p528) target = $region96
        $region95: #{tpu_custom_call.1} parent=91 // pred_region
          %532 = dma.done [#allocation4], 16
        $region96: #{tpu_custom_call.1} parent=91 // pred_fallthru
          _
        %533 = sfence
        %p534 = scmp.lt.s32.totalorder %s33, 1
        %s535 = scalar_select %p534, %s33, 1
        %s536 = smul.addr %s535, 8
        %s537 = scalar_lea.vmem %s0, %s536
        %p538 = pneg %p54
        %p539 = pneg %p51
        %p540 = pneg %p75
        %p541 = pneg %p72
        %p542 = pneg %p96
        %p543 = pneg %p93
        %p544 = pneg %p117
        %p545 = pneg %p114
        %p546 = pneg %p138
        %p547 = pneg %p135
        %p548 = pneg %p159
        %p549 = pneg %p156
        %p550 = pneg %p180
        %p551 = pneg %p177
        %p552 = pneg %p201
        %p553 = pneg %p198
        %p554 = pneg %p222
        %p555 = pneg %p219
        %p556 = pneg %p243
        %p557 = pneg %p240
        %p558 = pneg %p264
        %p559 = pneg %p261
        %p560 = pneg %p285
        %p561 = pneg %p282
        %p562 = pneg %p306
        %p563 = pneg %p303
        %p564 = pneg %p327
        %p565 = pneg %p324
        %p566 = pneg %p348
        %p567 = pneg %p345
        %p568 = pneg %p369
        %p569 = pneg %p366
        %p570 = pneg %p390
        %p571 = pneg %p387
        %p572 = pneg %p411
        %p573 = pneg %p408
        %p574 = pneg %p437
        %p575 = pneg %p434
        %s576 = sand.u32 %s424, 1
        %s577 = scalar_lea.sflag [#allocation3], %s576
        %s578 = sand.u32 %s424, 1
        %s579 = smul.addr %s578, 16
        %s580 = scalar_lea.vmem [#allocation5], %s579
        %p581 = scmp.lt.s32.totalorder %s33, 1
        %s582 = scalar_select %p581, %s33, 1
        %s583 = smul.addr %s582, 8
        %s584 = scalar_lea.vmem %s0, %s583
        %v586 = vlaneseq
        %v587 = vand.u32 %v586, 127
        %vm588 = vcmp.lt.s32.totalorder %v587, 0
        %v589 = vsub.s32 0, %v587
        %v590 = vsel %vm588, %v589, %v587
        %v591 = vshrl.u32 %v590, 7
        %v592 = vand.u32 %v590, 127
        %v593 = vsub.s32 0, %v592
        %v594 = vsel %vm588, %v593, %v592
        %vm595 = vcmp.ne.s32.totalorder %v594, 0
        %vm596 = vcmp.lt.s32.totalorder %v594, 0
        %vm597 = vmand %vm596, %vm595
        %v598 = vadd.s32 %v594, 128
        %v599 = vsel %vm597, %v598, %v594
        %vm600 = vcmp.lt.s32.totalorder %v599, 16
        %v601 = vsel %vm600, 1, 0
        %v602 = vcvt.s32.f32 %v601
        %v603 = vld [vmem:[%s584] sm:$0xff]
        %s604 = sld [smem:[#allocation2]]
        %s605 = sld [smem:[#allocation2 + $0x1]]
        %s606 = sld [smem:[#allocation2 + $0x2]]
        %607 = vrot.lane.b32.xlu0 %v603, 1
        %v608 = vpop.permute.xlu0 %607
        %v609 = vpack.c.bf16 %v608, %v608
        %v610 = vpack.c.bf16 %v603, %v603
        %v612 = vunpack.c.l.b16 %v610
        %v613 = vpack.c.b16 %v612, %v612
        %vm614 = vcmask 1043456
        %v617 = vsel %vm614, %v609, %v613
        %v619 = vld [vmem:[%s1] sm:$0xf]
        %v620 = vld [vmem:[%s2] sm:$0xff]
        %622 = vset.pattern.permute.xlu0 0
        %623 = vperm.xlu0 %622, %v620
        %v624 = vpop.permute.xlu0 %623
        %vm626 = vcmask 130048
        %v628 = vsel %vm626, %v619, 0
        %630 = vmatpush.bf16.msra.mxu0 0
        %631 = vmatpush.bf16.msra.mxu0 0
        %632 = vmatpush.bf16.msra.mxu0 0
        %633 = vmatpush.bf16.msra.mxu0 0
        %634 = vmatpush.bf16.msra.mxu0 0
        %635 = vmatpush.bf16.msra.mxu0 0
        %636 = vmatpush.bf16.msra.mxu0 0
        %637 = vmatpush.bf16.msra.mxu0 %v617
        %638 = vmatmul.bf16.gmra.mxu0 %v628
        %v639 = vpop.f32.mrf.mxu0
        %v640 = vadd.f32 %v624, %v639
        %v641 = vpop.f32.mrf.mxu0
        %642 = vdwg.mxu0
        %vm643 = vcmp.gt.f32.partialorder %v640, 0.0
        %v644 = vstv %s604
        %v645 = vmul.f32 %v644, %v640
        %v646 = vsel %vm643, %v640, %v645
        %v647 = vmul.f32 %v646, %v602
        %648 = vrot.lane.b32.xlu0 %v647, 1
        %v649 = vpop.permute.xlu0 %648
        %v650 = vpack.c.bf16 %v649, %v649
        %v651 = vpack.c.bf16 %v647, %v647
        %v653 = vunpack.c.l.b16 %v651
        %v654 = vpack.c.b16 %v653, %v653
        %v657 = vsel %vm614, %v650, %v654
        %v659 = vld [vmem:[%s3] sm:$0xf]
        %v660 = vld [vmem:[%s4] sm:$0xff]
        %662 = vset.pattern.permute.xlu0 0
        %663 = vperm.xlu0 %662, %v660
        %v664 = vpop.permute.xlu0 %663
        %v667 = vsel %vm626, %v659, 0
        %669 = vmatpush.bf16.msra.mxu0 0
        %670 = vmatpush.bf16.msra.mxu0 0
        %671 = vmatpush.bf16.msra.mxu0 0
        %672 = vmatpush.bf16.msra.mxu0 0
        %673 = vmatpush.bf16.msra.mxu0 0
        %674 = vmatpush.bf16.msra.mxu0 0
        %675 = vmatpush.bf16.msra.mxu0 0
        %676 = vmatpush.bf16.msra.mxu0 %v657
        %677 = vmatmul.bf16.gmra.mxu0 %v667
        %v678 = vpop.f32.mrf.mxu0
        %v679 = vadd.f32 %v664, %v678
        %v680 = vpop.f32.mrf.mxu0
        %681 = vdwg.mxu0
        %vm682 = vcmp.gt.f32.partialorder %v679, 0.0
        %v683 = vstv %s605
        %v684 = vmul.f32 %v683, %v679
        %v685 = vsel %vm682, %v679, %v684
        %v686 = vld [vmem:[%s5] sm:$0xf]
        %v687 = vld [vmem:[%s6] sm:$0xff]
        %689 = vset.pattern.permute.xlu0 0
        %690 = vperm.xlu0 %689, %v687
        %v691 = vpop.permute.xlu0 %690
        %vm693 = vcmask 64512
        %v695 = vsel %vm693, %v686, 0
        %v698 = vsel %vm614, %v610, 0
        %700 = vmatpush.bf16.msra.mxu0 0
        %701 = vmatpush.bf16.msra.mxu0 0
        %702 = vmatpush.bf16.msra.mxu0 0
        %703 = vmatpush.bf16.msra.mxu0 0
        %704 = vmatpush.bf16.msra.mxu0 0
        %705 = vmatpush.bf16.msra.mxu0 0
        %706 = vmatpush.bf16.msra.mxu0 0
        %707 = vmatpush.bf16.msra.mxu0 %v698
        %708 = vmatmul.bf16.gmra.mxu0 %v695
        %v709 = vpop.f32.mrf.mxu0
        %v710 = vadd.f32 %v691, %v709
        %v711 = vpop.f32.mrf.mxu0
        %712 = vdwg.mxu0
        %v713 = vadd.f32 %v685, %v710
        %vm714 = vcmp.gt.f32.partialorder %v713, 0.0
        %v715 = vstv %s606
        %v716 = vmul.f32 %v715, %v713
        %v717 = vsel %vm714, %v713, %v716
        %v718 = vmul.f32 %v717, %v602
        %s719 = sld [smem:[#allocation2 + $0x3]]
        %s720 = sld [smem:[#allocation2 + $0x4]]
        %s721 = sld [smem:[#allocation2 + $0x5]]
        %722 = vrot.lane.b32.xlu0 %v718, 2
        %v723 = vpop.permute.xlu0 %722
        %v724 = vpack.c.bf16 %v723, %v723
        %v725 = vpack.c.bf16 %v718, %v718
        %v727 = vunpack.c.l.b16 %v725
        %v728 = vpack.c.b16 %v727, %v727
        %v731 = vsel %vm614, %v724, %v728
        %v733 = vld [vmem:[%s7] sm:$0xf]
        %v734 = vld [vmem:[%s7 + $0x4] sm:$0xf]
        %v735 = vld [vmem:[%s8] sm:$0xff]
        %v736 = vld [vmem:[%s8 + $0x8] sm:$0xff]
        %738 = vset.pattern.permute.xlu0 0
        %739 = vperm.xlu0 %738, %v735
        %v740 = vpop.permute.xlu0 %739
        %743 = vset.pattern.permute.xlu0 0
        %744 = vperm.xlu0 %743, %v736
        %v745 = vpop.permute.xlu0 %744
        %v749 = vunpack.c.l.b16 %v733
        %v750 = vunpack.c.l.b16 %v734
        %v751 = vpack.c.b16 %v750, %v749
        %v753 = vsel %vm626, %v751, 0
        %755 = vmatpush.bf16.msra.mxu0 0
        %756 = vmatpush.bf16.msra.mxu0 0
        %757 = vmatpush.bf16.msra.mxu0 0
        %758 = vmatpush.bf16.msra.mxu0 0
        %759 = vmatpush.bf16.msra.mxu0 0
        %760 = vmatpush.bf16.msra.mxu0 0
        %761 = vmatpush.bf16.msra.mxu0 0
        %762 = vmatpush.bf16.msra.mxu0 %v731
        %763 = vmatmul.bf16.gmra.mxu0 %v753
        %v764 = vpop.f32.mrf.mxu0
        %v765 = vadd.f32 %v740, %v764
        %v766 = vpop.f32.mrf.mxu0
        %v767 = vadd.f32 %v745, %v766
        %768 = vdwg.mxu0
        %vm769 = vcmp.gt.f32.partialorder %v765, 0.0
        %vm770 = vcmp.gt.f32.partialorder %v767, 0.0
        %v771 = vstv %s719
        %v772 = vmul.f32 %v771, %v765
        %v773 = vmul.f32 %v771, %v767
        %v774 = vsel %vm769, %v765, %v772
        %v775 = vsel %vm770, %v767, %v773
        %v776 = vmul.f32 %v774, %v602
        %v777 = vmul.f32 %v775, %v602
        %778 = vrot.lane.b32.xlu0 %v776, 2
        %v779 = vpop.permute.xlu0 %778
        %780 = vrot.lane.b32.xlu0 %v777, 2
        %v781 = vpop.permute.xlu0 %780
        %v782 = vpack.c.bf16 %v779, %v779
        %v783 = vpack.c.bf16 %v781, %v781
        %v784 = vpack.c.bf16 %v776, %v776
        %v785 = vpack.c.bf16 %v777, %v777
        %v788 = vunpack.c.l.b16 %v782
        %v789 = vunpack.c.l.b16 %v783
        %v790 = vpack.c.b16 %v789, %v788
        %v794 = vunpack.c.l.b16 %v784
        %v795 = vunpack.c.l.b16 %v785
        %v796 = vpack.c.b16 %v795, %v794
        %v798 = vld [vmem:[%s9] sm:$0xf]
        %v799 = vld [vmem:[%s9 + $0x4] sm:$0xf]
        %v800 = vld [vmem:[%s10] sm:$0xff]
        %v801 = vld [vmem:[%s10 + $0x8] sm:$0xff]
        %803 = vset.pattern.permute.xlu0 0
        %804 = vperm.xlu0 %803, %v800
        %v805 = vpop.permute.xlu0 %804
        %808 = vset.pattern.permute.xlu0 0
        %809 = vperm.xlu0 %808, %v801
        %v810 = vpop.permute.xlu0 %809
        %v814 = vunpack.c.l.b16 %v798
        %v815 = vunpack.c.l.b16 %v799
        %v816 = vpack.c.b16 %v815, %v814
        %vm817 = vcmask 261120
        %v819 = vsel %vm817, %v816, 0
        %821 = vmatpush.bf16.msra.mxu0 0
        %822 = vmatpush.bf16.msra.mxu0 0
        %823 = vmatpush.bf16.msra.mxu0 0
        %824 = vmatpush.bf16.msra.mxu0 0
        %825 = vmatpush.bf16.msra.mxu0 0
        %826 = vmatpush.bf16.msra.mxu0 0
        %827 = vmatpush.bf16.msra.mxu0 %v796
        %828 = vmatpush.bf16.msra.mxu0 %v790
        %829 = vmatmul.bf16.gmra.mxu0 %v819
        %v830 = vpop.f32.mrf.mxu0
        %v831 = vadd.f32 %v805, %v830
        %v832 = vpop.f32.mrf.mxu0
        %v833 = vadd.f32 %v810, %v832
        %834 = vdwg.mxu0
        %vm835 = vcmp.gt.f32.partialorder %v831, 0.0
        %vm836 = vcmp.gt.f32.partialorder %v833, 0.0
        %v837 = vstv %s720
        %v838 = vmul.f32 %v837, %v831
        %v839 = vmul.f32 %v837, %v833
        %v840 = vsel %vm835, %v831, %v838
        %v841 = vsel %vm836, %v833, %v839
        %v842 = vld [vmem:[%s11] sm:$0xf]
        %v843 = vld [vmem:[%s11 + $0x4] sm:$0xf]
        %v844 = vld [vmem:[%s12] sm:$0xff]
        %v845 = vld [vmem:[%s12 + $0x8] sm:$0xff]
        %847 = vset.pattern.permute.xlu0 0
        %848 = vperm.xlu0 %847, %v844
        %v849 = vpop.permute.xlu0 %848
        %852 = vset.pattern.permute.xlu0 0
        %853 = vperm.xlu0 %852, %v845
        %v854 = vpop.permute.xlu0 %853
        %v858 = vunpack.c.l.b16 %v842
        %v859 = vunpack.c.l.b16 %v843
        %v860 = vpack.c.b16 %v859, %v858
        %v862 = vsel %vm693, %v860, 0
        %v865 = vsel %vm614, %v725, 0
        %867 = vmatpush.bf16.msra.mxu0 0
        %868 = vmatpush.bf16.msra.mxu0 0
        %869 = vmatpush.bf16.msra.mxu0 0
        %870 = vmatpush.bf16.msra.mxu0 0
        %871 = vmatpush.bf16.msra.mxu0 0
        %872 = vmatpush.bf16.msra.mxu0 0
        %873 = vmatpush.bf16.msra.mxu0 0
        %874 = vmatpush.bf16.msra.mxu0 %v865
        %875 = vmatmul.bf16.gmra.mxu0 %v862
        %v876 = vpop.f32.mrf.mxu0
        %v877 = vadd.f32 %v849, %v876
        %v878 = vpop.f32.mrf.mxu0
        %v879 = vadd.f32 %v854, %v878
        %880 = vdwg.mxu0
        %v881 = vadd.f32 %v840, %v877
        %v882 = vadd.f32 %v841, %v879
        %vm883 = vcmp.gt.f32.partialorder %v881, 0.0
        %vm884 = vcmp.gt.f32.partialorder %v882, 0.0
        %v885 = vstv %s721
        %v886 = vmul.f32 %v885, %v881
        %v887 = vmul.f32 %v885, %v882
        %v888 = vsel %vm883, %v881, %v886
        %v889 = vsel %vm884, %v882, %v887
        %v890 = vmul.f32 %v888, %v602
        %v891 = vmul.f32 %v889, %v602
        %s892 = sld [smem:[#allocation2 + $0x6]]
        %s893 = sld [smem:[#allocation2 + $0x7]]
        %s894 = sld [smem:[#allocation2 + $0x8]]
        %895 = vrot.lane.b32.xlu0 %v890, 4
        %v896 = vpop.permute.xlu0 %895
        %897 = vrot.lane.b32.xlu0 %v891, 4
        %v898 = vpop.permute.xlu0 %897
        %v899 = vpack.c.bf16 %v896, %v896
        %v900 = vpack.c.bf16 %v898, %v898
        %v901 = vpack.c.bf16 %v890, %v890
        %v902 = vpack.c.bf16 %v891, %v891
        %v905 = vunpack.c.l.b16 %v899
        %v906 = vunpack.c.l.b16 %v900
        %v907 = vpack.c.b16 %v906, %v905
        %v911 = vunpack.c.l.b16 %v901
        %v912 = vunpack.c.l.b16 %v902
        %v913 = vpack.c.b16 %v912, %v911
        %v915 = vld [vmem:[%s13] sm:$0xf]
        %v916 = vld [vmem:[%s13 + $0x4] sm:$0xf]
        %v917 = vld [vmem:[%s14] sm:$0xff]
        %v918 = vld [vmem:[%s14 + $0x8] sm:$0xff]
        %920 = vset.pattern.permute.xlu0 0
        %921 = vperm.xlu0 %920, %v917
        %v922 = vpop.permute.xlu0 %921
        %925 = vset.pattern.permute.xlu0 0
        %926 = vperm.xlu0 %925, %v918
        %v927 = vpop.permute.xlu0 %926
        %v931 = vunpack.c.l.b16 %v915
        %v932 = vunpack.c.l.b16 %v916
        %v933 = vpack.c.b16 %v932, %v931
        %v935 = vsel %vm817, %v933, 0
        %937 = vmatpush.bf16.msra.mxu0 0
        %938 = vmatpush.bf16.msra.mxu0 0
        %939 = vmatpush.bf16.msra.mxu0 0
        %940 = vmatpush.bf16.msra.mxu0 0
        %941 = vmatpush.bf16.msra.mxu0 0
        %942 = vmatpush.bf16.msra.mxu0 0
        %943 = vmatpush.bf16.msra.mxu0 %v913
        %944 = vmatpush.bf16.msra.mxu0 %v907
        %945 = vmatmul.bf16.gmra.mxu0 %v935
        %v946 = vpop.f32.mrf.mxu0
        %v947 = vadd.f32 %v922, %v946
        %v948 = vpop.f32.mrf.mxu0
        %v949 = vadd.f32 %v927, %v948
        %950 = vdwg.mxu0
        %vm951 = vcmp.gt.f32.partialorder %v947, 0.0
        %vm952 = vcmp.gt.f32.partialorder %v949, 0.0
        %v953 = vstv %s892
        %v954 = vmul.f32 %v953, %v947
        %v955 = vmul.f32 %v953, %v949
        %v956 = vsel %vm951, %v947, %v954
        %v957 = vsel %vm952, %v949, %v955
        %v958 = vmul.f32 %v956, %v602
        %v959 = vmul.f32 %v957, %v602
        %960 = vrot.lane.b32.xlu0 %v958, 4
        %v961 = vpop.permute.xlu0 %960
        %962 = vrot.lane.b32.xlu0 %v959, 4
        %v963 = vpop.permute.xlu0 %962
        %v964 = vpack.c.bf16 %v961, %v961
        %v965 = vpack.c.bf16 %v963, %v963
        %v966 = vpack.c.bf16 %v958, %v958
        %v967 = vpack.c.bf16 %v959, %v959
        %v970 = vunpack.c.l.b16 %v964
        %v971 = vunpack.c.l.b16 %v965
        %v972 = vpack.c.b16 %v971, %v970
        %v976 = vunpack.c.l.b16 %v966
        %v977 = vunpack.c.l.b16 %v967
        %v978 = vpack.c.b16 %v977, %v976
        %v980 = vld [vmem:[%s15] sm:$0xf]
        %v981 = vld [vmem:[%s15 + $0x4] sm:$0xf]
        %v982 = vld [vmem:[%s16] sm:$0xff]
        %v983 = vld [vmem:[%s16 + $0x8] sm:$0xff]
        %985 = vset.pattern.permute.xlu0 0
        %986 = vperm.xlu0 %985, %v982
        %v987 = vpop.permute.xlu0 %986
        %990 = vset.pattern.permute.xlu0 0
        %991 = vperm.xlu0 %990, %v983
        %v992 = vpop.permute.xlu0 %991
        %v996 = vunpack.c.l.b16 %v980
        %v997 = vunpack.c.l.b16 %v981
        %v998 = vpack.c.b16 %v997, %v996
        %v1000 = vsel %vm817, %v998, 0
        %1002 = vmatpush.bf16.msra.mxu0 0
        %1003 = vmatpush.bf16.msra.mxu0 0
        %1004 = vmatpush.bf16.msra.mxu0 0
        %1005 = vmatpush.bf16.msra.mxu0 0
        %1006 = vmatpush.bf16.msra.mxu0 0
        %1007 = vmatpush.bf16.msra.mxu0 0
        %1008 = vmatpush.bf16.msra.mxu0 %v978
        %1009 = vmatpush.bf16.msra.mxu0 %v972
        %1010 = vmatmul.bf16.gmra.mxu0 %v1000
        %v1011 = vpop.f32.mrf.mxu0
        %v1012 = vadd.f32 %v987, %v1011
        %v1013 = vpop.f32.mrf.mxu0
        %v1014 = vadd.f32 %v992, %v1013
        %1015 = vdwg.mxu0
        %vm1016 = vcmp.gt.f32.partialorder %v1012, 0.0
        %vm1017 = vcmp.gt.f32.partialorder %v1014, 0.0
        %v1018 = vstv %s893
        %v1019 = vmul.f32 %v1018, %v1012
        %v1020 = vmul.f32 %v1018, %v1014
        %v1021 = vsel %vm1016, %v1012, %v1019
        %v1022 = vsel %vm1017, %v1014, %v1020
        %v1023 = vadd.f32 %v1021, %v890
        %v1024 = vadd.f32 %v1022, %v891
        %vm1025 = vcmp.gt.f32.partialorder %v1023, 0.0
        %vm1026 = vcmp.gt.f32.partialorder %v1024, 0.0
        %v1027 = vstv %s894
        %v1028 = vmul.f32 %v1027, %v1023
        %v1029 = vmul.f32 %v1027, %v1024
        %v1030 = vsel %vm1025, %v1023, %v1028
        %v1031 = vsel %vm1026, %v1024, %v1029
        %v1032 = vmul.f32 %v1030, %v602
        %v1033 = vmul.f32 %v1031, %v602
        %1034 = vst [vmem:[%s580] sm:$0xff] %v1032
        %1035 = vst [vmem:[%s580 + $0x8] sm:$0xff] %v1033
        %s1036 = sand.u32 %s424, 1
        %s1037 = scalar_lea.sflag [#allocation3], %s1036
        %s1038 = sand.u32 %s424, 1
        %s1039 = smul.addr %s1038, 16
        %s1040 = scalar_lea.vmem [#allocation5], %s1039
        // Predicated region
        $region97: #{tpu_custom_call.1} parent=91 // pred_check
          %p1041 = pneg %p434
        $region98: #{tpu_custom_call.1} parent=91 // pred_check_branch
          %1043 = sbr.rel (%p1041) target = $region100
        $region99: #{tpu_custom_call.1} parent=91 // pred_region
          %1045 = vsyncadd %s1037, 0
          %s1046 = smul.addr %s33, 8
          %s1047 = scalar_lea.hbm %s18, %s1046
          %s1048 = sshll.u32 %s1040, 4
          %s1049 = int_to_ptr.vmem [resolvable:$true] %s1048
          %s1050 = sshll.u32 %s1047, 4
          %s1051 = int_to_ptr.hbm [resolvable:$true] %s1050
          %1056 = dma.vmem_to_hbm [thread:$0]  %s1049, 256, %s1051, %s1037, 128, 256, 8
        $region100: #{tpu_custom_call.1} parent=91 // pred_fallthru
          _
      $region92: #{tpu_custom_call.1} parent=5 // pred_fallthru
        _
      %p1057 = scmp.le.s32.totalorder 2, %s28
      // Predicated region
      $region101: #{tpu_custom_call.1} parent=5 // pred_check
        %p1058 = pneg %p1057
      $region102: #{tpu_custom_call.1} parent=5 // pred_check_branch
        %1060 = sbr.rel (%p1058) target = $region104
      $region103: #{tpu_custom_call.1} parent=5 // pred_region
        %s1061 = ssub.s32 %s28, 2
        // Predicated region
        $region105: #{tpu_custom_call.1} parent=103 // pred_check
          %p1062 = pneg %p440
        $region106: #{tpu_custom_call.1} parent=103 // pred_check_branch
          %1064 = sbr.rel (%p1062) target = $region108
        $region107: #{tpu_custom_call.1} parent=103 // pred_region
          %s1065 = sand.u32 %s425, 1
          %s1066 = scalar_lea.sflag [#allocation3], %s1065
          %s1067 = sand.u32 %s425, 1
          %s1068 = smul.addr %s1067, 16
          %s1069 = scalar_lea.vmem [#allocation5], %s1068
          %1071 = dma.done %s1066, 256
        $region108: #{tpu_custom_call.1} parent=103 // pred_fallthru
          _
      $region104: #{tpu_custom_call.1} parent=5 // pred_fallthru
        _
    $region6: #{tpu_custom_call.1} parent=1 // loop_footer
      %s32 = sadd.s32 1, %s28
    $region7: #{tpu_custom_call.1} parent=1 // loop_footer_branch
      %27 = sbr.rel target = $region3
    $region8: #{tpu_custom_call.1} parent=1 // loop_exit
      _
    %1072 = vsyncpa [#allocation3], 1
    %s1073 = scalar_lea.sflag [#allocation3], 1
    %1074 = vsyncpa %s1073, 1
    %1075 = vsyncpa [#allocation4], 1
    %s1076 = scalar_lea.sflag [#allocation4], 1
    %1077 = vsyncpa %s1076, 1

</llo_original>
